<compile_context>
chip_gen: v7x
topology: tpu7x:2x2x1
jax: 0.10.0
libtpu: 0.0.40
codegen_flags: <defaults>
</compile_context>

<pallas_src>
import functools

import jax
import jax.numpy as jnp
from jax.experimental import pallas as pl
from jax.experimental.pallas import tpu as pltpu


# ----------------------------- kernel body ---------------------------------
def _ffn_kernel(x_ref, w1_ref, w3_ref, w2_ref, o_ref, acc_ref):
    # x_ref:   (tm, dim)   bf16
    # w1_ref:  (dim, th)   bf16   gate-proj columns for hidden chunk k
    # w3_ref:  (dim, th)   bf16   up-proj   columns for hidden chunk k
    # w2_ref:  (th, dim)   bf16   down-proj rows    for hidden chunk k
    # o_ref:   (tm, dim)   out dtype
    # acc_ref: (tm, dim)   f32 VMEM accumulator (resident across k)
    k = pl.program_id(1)

    @pl.when(k == 0)
    def _():
        acc_ref[...] = jnp.zeros_like(acc_ref)

    x = x_ref[...]
    h1 = jnp.dot(x, w1_ref[...], preferred_element_type=jnp.float32)  # (tm, th)
    h3 = jnp.dot(x, w3_ref[...], preferred_element_type=jnp.float32)  # (tm, th)
    gated = (h1 * jax.nn.sigmoid(h1)) * h3                            # VPU + EUP
    # Partial down projection for this hidden chunk, accumulated in f32.
    acc_ref[...] += jnp.dot(gated.astype(w2_ref.dtype), w2_ref[...],
                            preferred_element_type=jnp.float32)

    @pl.when(k == pl.num_programs(1) - 1)
    def _():
        o_ref[...] = acc_ref[...].astype(o_ref.dtype)


# ------------------------------ helpers -------------------------------------
def _round_up(x, m):
    return ((x + m - 1) // m) * m


def _pick_hidden_chunk(hidden, th):
    """Largest multiple of 128 that divides `hidden` and is <= th (else full)."""
    th = min(th, hidden)
    cand = (th // 128) * 128
    while cand >= 128:
        if hidden % cand == 0:
            return cand
        cand -= 128
    return hidden  # no 128-aligned divisor <= th; keep the hidden dim untiled


def _chip_params():
    """Generation-aware (tm, th, vmem_capacity) defaults."""
    kind = ""
    try:
        kind = jax.devices()[0].device_kind.lower()
    except Exception:
        pass
    vmem = None
    try:
        vmem = int(pltpu.get_tpu_info().vmem_capacity_bytes)
    except Exception:
        vmem = None
    if vmem is None:
        vmem = (64 << 20) if "v7" in kind else (128 << 20)

    if "v5" in kind:
        # v5e: already compute-bound at tm=256; bigger tiles buy nothing.
        return 256, 512, vmem
    if vmem <= (64 << 20) or "v7" in kind:
        # v7x: 64 MiB VMEM / TC, low roofline ridge (~310 flops/byte).
        return 512, 256, vmem
    # v6e: 128 MiB VMEM, high ridge (~650 flops/byte) -> big token tile.
    return 1024, 512, vmem


# ------------------------------ jitted impl ----------------------------------
@functools.partial(jax.jit,
                   static_argnames=("tm", "th", "vmem_limit", "compute_dtype"))
def _feed_forward_impl(x, w1, w3, w2, *, tm, th, vmem_limit, compute_dtype):
    B, S, dim = x.shape
    hidden = w1.shape[1]
    out_dtype = x.dtype

    T = B * S
    T_pad = _round_up(T, tm)
    x2d = x.reshape(T, dim)
    if T_pad != T:
        x2d = jnp.pad(x2d, ((0, T_pad - T), (0, 0)))
    x2d = x2d.astype(compute_dtype)

    # Cast only if needed (callers should store weights in compute_dtype so this
    # is a no-op and no extra HBM pass happens per call).
    w1c = w1 if w1.dtype == compute_dtype else w1.astype(compute_dtype)
    w3c = w3 if w3.dtype == compute_dtype else w3.astype(compute_dtype)
    w2c = w2 if w2.dtype == compute_dtype else w2.astype(compute_dtype)

    kc = hidden // th
    grid = (T_pad // tm, kc)
    n_token_tiles = T_pad // tm

    isz = jnp.dtype(compute_dtype).itemsize
    osz = jnp.dtype(out_dtype).itemsize
    cost = pl.CostEstimate(
        flops=6 * T_pad * dim * hidden,          # 2*T*dim*H (w1) + (w3) + (w2)
        transcendentals=T_pad * hidden,          # sigmoid
        bytes_accessed=(T_pad * dim * isz                                  # x
                        + n_token_tiles * 3 * dim * hidden * isz          # weights
                        + T_pad * dim * osz),                             # out
    )

    out2d = pl.pallas_call(
        _ffn_kernel,
        out_shape=jax.ShapeDtypeStruct((T_pad, dim), out_dtype),
        grid_spec=pltpu.PrefetchScalarGridSpec(
            num_scalar_prefetch=0,
            grid=grid,
            in_specs=[
                pl.BlockSpec((tm, dim), lambda i, k: (i, 0)),   # x tile
                pl.BlockSpec((dim, th), lambda i, k: (0, k)),   # w1 chunk
                pl.BlockSpec((dim, th), lambda i, k: (0, k)),   # w3 chunk
                pl.BlockSpec((th, dim), lambda i, k: (k, 0)),   # w2 chunk
            ],
            out_specs=pl.BlockSpec((tm, dim), lambda i, k: (i, 0)),
            scratch_shapes=[pltpu.VMEM((tm, dim), jnp.float32)],
        ),
        compiler_params=pltpu.CompilerParams(
            dimension_semantics=("parallel", "arbitrary"),
            vmem_limit_bytes=vmem_limit,
        ),
        cost_estimate=cost,
    )(x2d, w1c, w3c, w2c)

    return out2d[:T].reshape(B, S, dim)


# ------------------------------ public wrapper --------------------------------
def feed_forward(x, w1, w3, w2, *, tm=None, th=None, compute_dtype=jnp.bfloat16):
    """x: (B, S, dim). w1/w3: (dim, hidden). w2: (hidden, dim). Bias-free SwiGLU."""
    B, S, dim = x.shape
    hidden = w1.shape[1]
    T = B * S

    tm_def, th_def, vmem_cap = _chip_params()
    tm = tm_def if tm is None else tm
    th = th_def if th is None else th

    # Token tile: lane/sublane-dense (multiple of 128) whenever T >= 128.
    if T >= 128:
        tm = max(128, min(_round_up(tm, 128), _round_up(T, 128)))
    else:
        tm = max(8, _round_up(T, 8))

    # Hidden chunk must divide `hidden` and be 128-aligned (or the full dim).
    th = _pick_hidden_chunk(hidden, th)

    # Shrink-to-fit against the chip's VMEM (double-buffered tiles + f32 acc).
    isz = jnp.dtype(compute_dtype).itemsize
    osz = jnp.dtype(x.dtype).itemsize

    def tile_bytes(tm_, th_):
        return (2 * (tm_ * dim * isz           # x tile
                     + 2 * dim * th_ * isz     # w1 + w3 tiles
                     + th_ * dim * isz         # w2 tile
                     + tm_ * dim * osz)        # out tile
                + tm_ * dim * 4)               # resident f32 accumulator

    budget = max(vmem_cap - (8 << 20), 32 << 20)   # headroom for Mosaic scratch
    while tile_bytes(tm, th) > budget and th > 128:
        new_th = _pick_hidden_chunk(hidden, max(128, th // 2))
        if new_th >= th:
            break
        th = new_th
    while tile_bytes(tm, th) > budget and tm > 128:
        tm = max(128, (tm // 2 // 128) * 128)

    vmem_need = tile_bytes(tm, th) + (4 << 20)
    vmem_limit = int(min(max(vmem_need, 32 << 20), vmem_cap - (4 << 20)))

    return _feed_forward_impl(x, w1, w3, w2, tm=int(tm), th=int(th),
                              vmem_limit=vmem_limit, compute_dtype=compute_dtype)


def compute_hidden_dim(dim, hidden_dim, multiple_of, ffn_dim_multiplier=None):
    hidden_dim = int(2 * hidden_dim / 3)
    if ffn_dim_multiplier is not None:
        hidden_dim = int(ffn_dim_multiplier * hidden_dim)
    hidden_dim = multiple_of * ((hidden_dim + multiple_of - 1) // multiple_of)
    return hidden_dim


if __name__ == "__main__":
    # Small llama-like config (world_size=1, no model-parallel sharding).
    dim = 128
    base_hidden = 4 * dim
    multiple_of = 128
    hidden = compute_hidden_dim(dim, base_hidden, multiple_of, None)  # -> 384

    B, S = 4, 64  # T = 256 tokens

    key = jax.random.PRNGKey(0)
    kx, k1, k2, k3 = jax.random.split(key, 4)
    x = jax.random.normal(kx, (B, S, dim), dtype=jnp.float32)
    # Weights stored (in_features, out_features), i.e. transposed vs nn.Linear,
    # pre-cast to bf16 once (model storage dtype) so no per-call cast pass.
    w1 = (jax.random.normal(k1, (dim, hidden), dtype=jnp.float32) * 0.02).astype(jnp.bfloat16)
    w3 = (jax.random.normal(k3, (dim, hidden), dtype=jnp.float32) * 0.02).astype(jnp.bfloat16)
    w2 = (jax.random.normal(k2, (hidden, dim), dtype=jnp.float32) * 0.02).astype(jnp.bfloat16)

    out = feed_forward(x, w1, w3, w2)
    jax.block_until_ready(out)

    # Reference in the same mixed precision as the kernel (bf16 in, f32 acc).
    xb = x.reshape(-1, dim).astype(jnp.bfloat16)
    h1 = jnp.dot(xb, w1, preferred_element_type=jnp.float32)
    h3 = jnp.dot(xb, w3, preferred_element_type=jnp.float32)
    gated = (h1 * jax.nn.sigmoid(h1)) * h3
    ref = jnp.dot(gated.astype(jnp.bfloat16), w2,
                  preferred_element_type=jnp.float32).reshape(B, S, dim)
    assert jnp.allclose(out, ref.astype(out.dtype), atol=1e-2, rtol=1e-2), \
        "mismatch vs mixed-precision reference"

    # Loose sanity check against a full-f32 reference (bf16 rounding expected).
    h1f = x.reshape(-1, dim) @ w1.astype(jnp.float32)
    h3f = x.reshape(-1, dim) @ w3.astype(jnp.float32)
    reff = (((h1f * jax.nn.sigmoid(h1f)) * h3f) @ w2.astype(jnp.float32)).reshape(B, S, dim)
    assert jnp.allclose(out, reff, atol=5e-2, rtol=5e-2), "mismatch vs f32 reference"

    print("KERNEL_OK")
</pallas_src>

<mosaic_0001>
module attributes {stable_mosaic.version = 11 : i64} {
  func.func @_ffn_kernel(%arg0: i32, %arg1: i32, %arg2: memref<256x128xbf16, #tpu.memory_space<vmem>>, %arg3: memref<128x384xbf16, #tpu.memory_space<vmem>>, %arg4: memref<128x384xbf16, #tpu.memory_space<vmem>>, %arg5: memref<384x128xbf16, #tpu.memory_space<vmem>>, %arg6: memref<256x128xf32, #tpu.memory_space<vmem>>, %arg7: memref<256x128xf32, #tpu.memory_space<vmem>>) attributes {dimension_semantics = [#tpu.dimension_semantics<parallel>, #tpu.dimension_semantics<arbitrary>], iteration_bounds = array<i64: 1, 1>, scalar_prefetch = 0 : i64, scratch_operands = 1 : i64, tpu.core_type = #tpu.core_type<tc>, window_params = [{transform_indices = @transform_0, window_bounds = array<i64: 256, 128>}, {transform_indices = @transform_1, window_bounds = array<i64: 128, 384>}, {transform_indices = @transform_2, window_bounds = array<i64: 128, 384>}, {transform_indices = @transform_3, window_bounds = array<i64: 384, 128>}, {transform_indices = @transform_4, window_bounds = array<i64: 256, 128>}]} {
    %c0_i32 = arith.constant 0 : i32
    %0 = arith.cmpi eq, %arg1, %c0_i32 : i32
    %1 = arith.extui %0 : i1 to i32
    %c0_i32_0 = arith.constant 0 : i32
    %2 = arith.cmpi ne, %1, %c0_i32_0 : i32
    scf.if %2 {
      %cst_17 = arith.constant 0.000000e+00 : f32
      %24 = vector.broadcast %cst_17 : f32 to vector<256x128xf32>
      %c0_18 = arith.constant 0 : index
      %c0_19 = arith.constant 0 : index
      %25 = vector.load %arg7[%c0_18, %c0_19] : memref<256x128xf32, #tpu.memory_space<vmem>>, vector<256x128xf32>
      tpu.vector_store %arg7[%c0_18, %c0_19], %24 {strides = array<i32>} : memref<256x128xf32, #tpu.memory_space<vmem>>, vector<256x128xf32>,
    } else {
    }
    %c0 = arith.constant 0 : index
    %c0_1 = arith.constant 0 : index
    %3 = vector.load %arg2[%c0, %c0_1] : memref<256x128xbf16, #tpu.memory_space<vmem>>, vector<256x128xbf16>
    %c0_2 = arith.constant 0 : index
    %c0_3 = arith.constant 0 : index
    %4 = vector.load %arg3[%c0_2, %c0_3] : memref<128x384xbf16, #tpu.memory_space<vmem>>, vector<128x384xbf16>
    %cst = arith.constant dense<0.000000e+00> : vector<256x384xf32>
    %5 = tpu.matmul %3, %4, %cst {dimension_numbers = #tpu.dot_dimension_numbers<[1], [0], [0], [1], [0, 0, 1, 1], [], []>} : vector<256x128xbf16>, vector<128x384xbf16>, vector<256x384xf32> -> vector<256x384xf32>
    %c0_4 = arith.constant 0 : index
    %c0_5 = arith.constant 0 : index
    %6 = vector.load %arg4[%c0_4, %c0_5] : memref<128x384xbf16, #tpu.memory_space<vmem>>, vector<128x384xbf16>
    %cst_6 = arith.constant dense<0.000000e+00> : vector<256x384xf32>
    %7 = tpu.matmul %3, %6, %cst_6 {dimension_numbers = #tpu.dot_dimension_numbers<[1], [0], [0], [1], [0, 0, 1, 1], [], []>} : vector<256x128xbf16>, vector<128x384xbf16>, vector<256x384xf32> -> vector<256x384xf32>
    %8 = arith.negf %5 : vector<256x384xf32>
    %9 = math.exp %8 : vector<256x384xf32>
    %cst_7 = arith.constant 1.000000e+00 : f32
    %10 = vector.broadcast %cst_7 : f32 to vector<256x384xf32>
    %11 = arith.addf %10, %9 : vector<256x384xf32>
    %12 = arith.divf %10, %11 : vector<256x384xf32>
    %13 = arith.mulf %5, %12 : vector<256x384xf32>
    %14 = arith.mulf %13, %7 : vector<256x384xf32>
    %c0_8 = arith.constant 0 : index
    %c0_9 = arith.constant 0 : index
    %15 = vector.load %arg7[%c0_8, %c0_9] : memref<256x128xf32, #tpu.memory_space<vmem>>, vector<256x128xf32>
    %16 = arith.truncf %14 : vector<256x384xf32> to vector<256x384xbf16>
    %c0_10 = arith.constant 0 : index
    %c0_11 = arith.constant 0 : index
    %17 = vector.load %arg5[%c0_10, %c0_11] : memref<384x128xbf16, #tpu.memory_space<vmem>>, vector<384x128xbf16>
    %cst_12 = arith.constant dense<0.000000e+00> : vector<256x128xf32>
    %18 = tpu.matmul %16, %17, %cst_12 {dimension_numbers = #tpu.dot_dimension_numbers<[1], [0], [0], [1], [0, 0, 1, 1], [], []>} : vector<256x384xbf16>, vector<384x128xbf16>, vector<256x128xf32> -> vector<256x128xf32>
    %19 = arith.addf %15, %18 : vector<256x128xf32>
    %c0_13 = arith.constant 0 : index
    %c0_14 = arith.constant 0 : index
    %20 = vector.load %arg7[%c0_13, %c0_14] : memref<256x128xf32, #tpu.memory_space<vmem>>, vector<256x128xf32>
    tpu.vector_store %arg7[%c0_13, %c0_14], %19 {strides = array<i32>} : memref<256x128xf32, #tpu.memory_space<vmem>>, vector<256x128xf32>,
    %c0_i32_15 = arith.constant 0 : i32
    %21 = arith.cmpi eq, %arg1, %c0_i32_15 : i32
    %22 = arith.extui %21 : i1 to i32
    %c0_i32_16 = arith.constant 0 : i32
    %23 = arith.cmpi ne, %22, %c0_i32_16 : i32
    scf.if %23 {
      %c0_17 = arith.constant 0 : index
      %c0_18 = arith.constant 0 : index
      %24 = vector.load %arg7[%c0_17, %c0_18] : memref<256x128xf32, #tpu.memory_space<vmem>>, vector<256x128xf32>
      %c0_19 = arith.constant 0 : index
      %c0_20 = arith.constant 0 : index
      %25 = vector.load %arg6[%c0_19, %c0_20] : memref<256x128xf32, #tpu.memory_space<vmem>>, vector<256x128xf32>
      tpu.vector_store %arg6[%c0_19, %c0_20], %24 {strides = array<i32>} : memref<256x128xf32, #tpu.memory_space<vmem>>, vector<256x128xf32>,
    } else {
    }
    return
  }
  func.func @transform_0(%arg0: i32, %arg1: i32) -> (i32, i32) {
    %c0_i32 = arith.constant 0 : i32
    %c0_i32_0 = arith.constant 0 : i32
    return %arg0, %c0_i32 : i32, i32
  }
  func.func @transform_1(%arg0: i32, %arg1: i32) -> (i32, i32) {
    %c0_i32 = arith.constant 0 : i32
    %c0_i32_0 = arith.constant 0 : i32
    return %c0_i32, %arg1 : i32, i32
  }
  func.func @transform_2(%arg0: i32, %arg1: i32) -> (i32, i32) {
    %c0_i32 = arith.constant 0 : i32
    %c0_i32_0 = arith.constant 0 : i32
    return %c0_i32, %arg1 : i32, i32
  }
  func.func @transform_3(%arg0: i32, %arg1: i32) -> (i32, i32) {
    %c0_i32 = arith.constant 0 : i32
    %c0_i32_0 = arith.constant 0 : i32
    return %arg1, %c0_i32 : i32, i32
  }
  func.func @transform_4(%arg0: i32, %arg1: i32) -> (i32, i32) {
    %c0_i32 = arith.constant 0 : i32
    %c0_i32_0 = arith.constant 0 : i32
    return %arg0, %c0_i32 : i32, i32
  }
}

</mosaic_0001>

<llo_original>
// kernel: _feed_forward_impl.1
$region0: #{_feed_forward_impl.1}
  #allocation0 [shape = 'u32[]', space=smem, size = 0x4, offset = 0x4, fixed_abs, tag = 'smem constant byte address 0x4 - core index']
  #allocation1 [shape = 'u32[144,128]{1,0:T(1,128)}', space=vmem, size = 0x12000, scoped, tag = 'internal scratch']
  #allocation2 [shape = 'f32[256,128]{1,0:T(8,128)}', space=vmem, size = 0x20000, scoped, tag = 'scratch operand']
  %s0 = inlined_call_operand.vmem [shape: bf16[256,128], index: 0, kind: input, shape index: {}]
  %s1 = inlined_call_operand.vmem [shape: bf16[128,384], index: 1, kind: input, shape index: {}]
  %s2 = inlined_call_operand.vmem [shape: bf16[128,384], index: 2, kind: input, shape index: {}]
  %s3 = inlined_call_operand.hbm [shape: bf16[384,128], index: 3, kind: input, shape index: {}]
  %s4 = inlined_call_operand.hbm [shape: f32[256,128], index: 4, kind: output, shape index: {}]
  %s5 = sld [smem:[#allocation0]]
  $region38: #{_feed_forward_impl.1} parent=0
    _
  %s7 = ssub.s32 1, %s5
  %s8 = scalar_select 0, %s7, %s5
  $region1: #{_feed_forward_impl.1} parent=0
    #allocation3 [shape = 'u8[98304]{0}', space=vmem, size = 0x18000, scoped, tag = 'input window, operand 3, single buffered']
    #allocation4 [shape = 's32[1]{0}', space=sflag, size = 0x4, scoped, tag = 'scoped memory for _feed_forward_impl.1']
    #allocation5 [shape = 's32[1]{0}', space=sflag, size = 0x4, scoped, tag = 'scoped memory for _feed_forward_impl.1']
    #allocation6 [shape = 'u8[131072]{0}', space=vmem, size = 0x20000, scoped, tag = 'output window, operand 0, single buffered']
    %9 = vsyncpa [#allocation4], 0
    %10 = vsyncpa [#allocation5], 0
    // Predicated region
    $region2: #{_feed_forward_impl.1} parent=1 // pred_check
      _
    $region3: #{_feed_forward_impl.1} parent=1 // pred_check_branch
      %12 = sbr.rel (0) target = $region5
    $region4: #{_feed_forward_impl.1} parent=1 // pred_region
      _
    $region5: #{_feed_forward_impl.1} parent=1 // pred_fallthru
      _
    // Predicated region
    $region6: #{_feed_forward_impl.1} parent=1 // pred_check
      _
    $region7: #{_feed_forward_impl.1} parent=1 // pred_check_branch
      %14 = sbr.rel (0) target = $region9
    $region8: #{_feed_forward_impl.1} parent=1 // pred_region
      _
    $region9: #{_feed_forward_impl.1} parent=1 // pred_fallthru
      _
    // Predicated region
    $region10: #{_feed_forward_impl.1} parent=1 // pred_check
      _
    $region11: #{_feed_forward_impl.1} parent=1 // pred_check_branch
      %16 = sbr.rel (0) target = $region13
    $region12: #{_feed_forward_impl.1} parent=1 // pred_region
      _
    $region13: #{_feed_forward_impl.1} parent=1 // pred_fallthru
      _
    // Predicated region
    $region14: #{_feed_forward_impl.1} parent=1 // pred_check
      _
    $region15: #{_feed_forward_impl.1} parent=1 // pred_check_branch
      %18 = sbr.rel (0) target = $region17
    $region16: #{_feed_forward_impl.1} parent=1 // pred_region
      %s20 = ssub.s32 3072, 3072
      %21 = vsyncadd [#allocation4], %s20
      %s22 = sshll.u32 [#allocation3], 4
      %s23 = int_to_ptr.vmem [resolvable:$true] %s22
      %28 = dma.hbm_to_vmem [thread:$0]  %s3, 3072, %s23, [#allocation4], 64, 64, 4
    $region17: #{_feed_forward_impl.1} parent=1 // pred_fallthru
      _
    // Predicated region
    $region18: #{_feed_forward_impl.1} parent=1 // pred_check
      _
    $region19: #{_feed_forward_impl.1} parent=1 // pred_check_branch
      %30 = sbr.rel (0) target = $region21
    $region20: #{_feed_forward_impl.1} parent=1 // pred_region
      %31 = dma.done [#allocation4], 3072
    $region21: #{_feed_forward_impl.1} parent=1 // pred_fallthru
      _
    %p33 = scmp.eq.s32.totalorder 0, 0
    // Predicated region
    $region22: #{_feed_forward_impl.1} parent=1 // pred_check
      %p34 = pneg %p33
    $region23: #{_feed_forward_impl.1} parent=1 // pred_check_branch
      %36 = sbr.rel (%p34) target = $region25
    $region24: #{_feed_forward_impl.1} parent=1 // pred_region
      %37 = vst [vmem:[#allocation2] sm:$0xff] 0.0
      %38 = vst [vmem:[#allocation2 + $0x8] sm:$0xff] 0.0
      %39 = vst [vmem:[#allocation2 + $0x10] sm:$0xff] 0.0
      %40 = vst [vmem:[#allocation2 + $0x18] sm:$0xff] 0.0
      %41 = vst [vmem:[#allocation2 + $0x20] sm:$0xff] 0.0
      %42 = vst [vmem:[#allocation2 + $0x28] sm:$0xff] 0.0
      %43 = vst [vmem:[#allocation2 + $0x30] sm:$0xff] 0.0
      %44 = vst [vmem:[#allocation2 + $0x38] sm:$0xff] 0.0
      %45 = vst [vmem:[#allocation2 + $0x40] sm:$0xff] 0.0
      %46 = vst [vmem:[#allocation2 + $0x48] sm:$0xff] 0.0
      %47 = vst [vmem:[#allocation2 + $0x50] sm:$0xff] 0.0
      %48 = vst [vmem:[#allocation2 + $0x58] sm:$0xff] 0.0
      %49 = vst [vmem:[#allocation2 + $0x60] sm:$0xff] 0.0
      %50 = vst [vmem:[#allocation2 + $0x68] sm:$0xff] 0.0
      %51 = vst [vmem:[#allocation2 + $0x70] sm:$0xff] 0.0
      %52 = vst [vmem:[#allocation2 + $0x78] sm:$0xff] 0.0
      %53 = vst [vmem:[#allocation2 + $0x80] sm:$0xff] 0.0
      %54 = vst [vmem:[#allocation2 + $0x88] sm:$0xff] 0.0
      %55 = vst [vmem:[#allocation2 + $0x90] sm:$0xff] 0.0
      %56 = vst [vmem:[#allocation2 + $0x98] sm:$0xff] 0.0
      %57 = vst [vmem:[#allocation2 + $0xa0] sm:$0xff] 0.0
      %58 = vst [vmem:[#allocation2 + $0xa8] sm:$0xff] 0.0
      %59 = vst [vmem:[#allocation2 + $0xb0] sm:$0xff] 0.0
      %60 = vst [vmem:[#allocation2 + $0xb8] sm:$0xff] 0.0
      %61 = vst [vmem:[#allocation2 + $0xc0] sm:$0xff] 0.0
      %62 = vst [vmem:[#allocation2 + $0xc8] sm:$0xff] 0.0
      %63 = vst [vmem:[#allocation2 + $0xd0] sm:$0xff] 0.0
      %64 = vst [vmem:[#allocation2 + $0xd8] sm:$0xff] 0.0
      %65 = vst [vmem:[#allocation2 + $0xe0] sm:$0xff] 0.0
      %66 = vst [vmem:[#allocation2 + $0xe8] sm:$0xff] 0.0
      %67 = vst [vmem:[#allocation2 + $0xf0] sm:$0xff] 0.0
      %68 = vst [vmem:[#allocation2 + $0xf8] sm:$0xff] 0.0
    $region25: #{_feed_forward_impl.1} parent=1 // pred_fallthru
      _
    %v69 = vld [vmem:[%s0] sm:$0xf]
    %v70 = vld [vmem:[%s0 + $0x4] sm:$0xf]
    %v71 = vld [vmem:[%s0 + $0x8] sm:$0xf]
    %v72 = vld [vmem:[%s0 + $0xc] sm:$0xf]
    %v73 = vld [vmem:[%s0 + $0x10] sm:$0xf]
    %v74 = vld [vmem:[%s0 + $0x14] sm:$0xf]
    %v75 = vld [vmem:[%s0 + $0x18] sm:$0xf]
    %v76 = vld [vmem:[%s0 + $0x1c] sm:$0xf]
    %v77 = vld [vmem:[%s0 + $0x20] sm:$0xf]
    %v78 = vld [vmem:[%s0 + $0x24] sm:$0xf]
    %v79 = vld [vmem:[%s0 + $0x28] sm:$0xf]
    %v80 = vld [vmem:[%s0 + $0x2c] sm:$0xf]
    %v81 = vld [vmem:[%s0 + $0x30] sm:$0xf]
    %v82 = vld [vmem:[%s0 + $0x34] sm:$0xf]
    %v83 = vld [vmem:[%s0 + $0x38] sm:$0xf]
    %v84 = vld [vmem:[%s0 + $0x3c] sm:$0xf]
    %v85 = vld [vmem:[%s0 + $0x40] sm:$0xf]
    %v86 = vld [vmem:[%s0 + $0x44] sm:$0xf]
    %v87 = vld [vmem:[%s0 + $0x48] sm:$0xf]
    %v88 = vld [vmem:[%s0 + $0x4c] sm:$0xf]
    %v89 = vld [vmem:[%s0 + $0x50] sm:$0xf]
    %v90 = vld [vmem:[%s0 + $0x54] sm:$0xf]
    %v91 = vld [vmem:[%s0 + $0x58] sm:$0xf]
    %v92 = vld [vmem:[%s0 + $0x5c] sm:$0xf]
    %v93 = vld [vmem:[%s0 + $0x60] sm:$0xf]
    %v94 = vld [vmem:[%s0 + $0x64] sm:$0xf]
    %v95 = vld [vmem:[%s0 + $0x68] sm:$0xf]
    %v96 = vld [vmem:[%s0 + $0x6c] sm:$0xf]
    %v97 = vld [vmem:[%s0 + $0x70] sm:$0xf]
    %v98 = vld [vmem:[%s0 + $0x74] sm:$0xf]
    %v99 = vld [vmem:[%s0 + $0x78] sm:$0xf]
    %v100 = vld [vmem:[%s0 + $0x7c] sm:$0xf]
    %v101 = vld [vmem:[%s1] sm:$0xff]
    %v102 = vld [vmem:[%s1 + $0x8] sm:$0xf]
    %v103 = vld [vmem:[%s1 + $0xc] sm:$0xff]
    %v104 = vld [vmem:[%s1 + $0x14] sm:$0xf]
    %v105 = vld [vmem:[%s1 + $0x18] sm:$0xff]
    %v106 = vld [vmem:[%s1 + $0x20] sm:$0xf]
    %v107 = vld [vmem:[%s1 + $0x24] sm:$0xff]
    %v108 = vld [vmem:[%s1 + $0x2c] sm:$0xf]
    %v109 = vld [vmem:[%s1 + $0x30] sm:$0xff]
    %v110 = vld [vmem:[%s1 + $0x38] sm:$0xf]
    %v111 = vld [vmem:[%s1 + $0x3c] sm:$0xff]
    %v112 = vld [vmem:[%s1 + $0x44] sm:$0xf]
    %v113 = vld [vmem:[%s1 + $0x48] sm:$0xff]
    %v114 = vld [vmem:[%s1 + $0x50] sm:$0xf]
    %v115 = vld [vmem:[%s1 + $0x54] sm:$0xff]
    %v116 = vld [vmem:[%s1 + $0x5c] sm:$0xf]
    %v117 = vld [vmem:[%s1 + $0x60] sm:$0xff]
    %v118 = vld [vmem:[%s1 + $0x68] sm:$0xf]
    %v119 = vld [vmem:[%s1 + $0x6c] sm:$0xff]
    %v120 = vld [vmem:[%s1 + $0x74] sm:$0xf]
    %v121 = vld [vmem:[%s1 + $0x78] sm:$0xff]
    %v122 = vld [vmem:[%s1 + $0x80] sm:$0xf]
    %v123 = vld [vmem:[%s1 + $0x84] sm:$0xff]
    %v124 = vld [vmem:[%s1 + $0x8c] sm:$0xf]
    %v125 = vld [vmem:[%s1 + $0x90] sm:$0xff]
    %v126 = vld [vmem:[%s1 + $0x98] sm:$0xf]
    %v127 = vld [vmem:[%s1 + $0x9c] sm:$0xff]
    %v128 = vld [vmem:[%s1 + $0xa4] sm:$0xf]
    %v129 = vld [vmem:[%s1 + $0xa8] sm:$0xff]
    %v130 = vld [vmem:[%s1 + $0xb0] sm:$0xf]
    %v131 = vld [vmem:[%s1 + $0xb4] sm:$0xff]
    %v132 = vld [vmem:[%s1 + $0xbc] sm:$0xf]
    %v165 = vunpack.c.l.b16 %v69
    %v166 = vunpack.c.l.b16 %v70
    %v167 = vunpack.c.l.b16 %v71
    %v168 = vunpack.c.l.b16 %v72
    %v169 = vunpack.c.l.b16 %v73
    %v170 = vunpack.c.l.b16 %v74
    %v171 = vunpack.c.l.b16 %v75
    %v172 = vunpack.c.l.b16 %v76
    %v173 = vunpack.c.l.b16 %v77
    %v174 = vunpack.c.l.b16 %v78
    %v175 = vunpack.c.l.b16 %v79
    %v176 = vunpack.c.l.b16 %v80
    %v177 = vunpack.c.l.b16 %v81
    %v178 = vunpack.c.l.b16 %v82
    %v179 = vunpack.c.l.b16 %v83
    %v180 = vunpack.c.l.b16 %v84
    %v181 = vunpack.c.l.b16 %v85
    %v182 = vunpack.c.l.b16 %v86
    %v183 = vunpack.c.l.b16 %v87
    %v184 = vunpack.c.l.b16 %v88
    %v185 = vunpack.c.l.b16 %v89
    %v186 = vunpack.c.l.b16 %v90
    %v187 = vunpack.c.l.b16 %v91
    %v188 = vunpack.c.l.b16 %v92
    %v189 = vunpack.c.l.b16 %v93
    %v190 = vunpack.c.l.b16 %v94
    %v191 = vunpack.c.l.b16 %v95
    %v192 = vunpack.c.l.b16 %v96
    %v193 = vunpack.c.l.b16 %v97
    %v194 = vunpack.c.l.b16 %v98
    %v195 = vunpack.c.l.b16 %v99
    %v196 = vunpack.c.l.b16 %v100
    %v197 = vpack.c.b16 %v166, %v165
    %v198 = vpack.c.b16 %v168, %v167
    %v199 = vpack.c.b16 %v170, %v169
    %v200 = vpack.c.b16 %v172, %v171
    %v201 = vpack.c.b16 %v174, %v173
    %v202 = vpack.c.b16 %v176, %v175
    %v203 = vpack.c.b16 %v178, %v177
    %v204 = vpack.c.b16 %v180, %v179
    %v205 = vpack.c.b16 %v182, %v181
    %v206 = vpack.c.b16 %v184, %v183
    %v207 = vpack.c.b16 %v186, %v185
    %v208 = vpack.c.b16 %v188, %v187
    %v209 = vpack.c.b16 %v190, %v189
    %v210 = vpack.c.b16 %v192, %v191
    %v211 = vpack.c.b16 %v194, %v193
    %v212 = vpack.c.b16 %v196, %v195
    %v261 = vunpack.c.l.b16 %v101
    %v262 = vunpack.c.h.b16 %v101
    %v263 = vunpack.c.l.b16 %v102
    %v264 = vunpack.c.l.b16 %v103
    %v265 = vunpack.c.h.b16 %v103
    %v266 = vunpack.c.l.b16 %v104
    %v267 = vunpack.c.l.b16 %v105
    %v268 = vunpack.c.h.b16 %v105
    %v269 = vunpack.c.l.b16 %v106
    %v270 = vunpack.c.l.b16 %v107
    %v271 = vunpack.c.h.b16 %v107
    %v272 = vunpack.c.l.b16 %v108
    %v273 = vunpack.c.l.b16 %v109
    %v274 = vunpack.c.h.b16 %v109
    %v275 = vunpack.c.l.b16 %v110
    %v276 = vunpack.c.l.b16 %v111
    %v277 = vunpack.c.h.b16 %v111
    %v278 = vunpack.c.l.b16 %v112
    %v279 = vunpack.c.l.b16 %v113
    %v280 = vunpack.c.h.b16 %v113
    %v281 = vunpack.c.l.b16 %v114
    %v282 = vunpack.c.l.b16 %v115
    %v283 = vunpack.c.h.b16 %v115
    %v284 = vunpack.c.l.b16 %v116
    %v285 = vunpack.c.l.b16 %v117
    %v286 = vunpack.c.h.b16 %v117
    %v287 = vunpack.c.l.b16 %v118
    %v288 = vunpack.c.l.b16 %v119
    %v289 = vunpack.c.h.b16 %v119
    %v290 = vunpack.c.l.b16 %v120
    %v291 = vunpack.c.l.b16 %v121
    %v292 = vunpack.c.h.b16 %v121
    %v293 = vunpack.c.l.b16 %v122
    %v294 = vunpack.c.l.b16 %v123
    %v295 = vunpack.c.h.b16 %v123
    %v296 = vunpack.c.l.b16 %v124
    %v297 = vunpack.c.l.b16 %v125
    %v298 = vunpack.c.h.b16 %v125
    %v299 = vunpack.c.l.b16 %v126
    %v300 = vunpack.c.l.b16 %v127
    %v301 = vunpack.c.h.b16 %v127
    %v302 = vunpack.c.l.b16 %v128
    %v303 = vunpack.c.l.b16 %v129
    %v304 = vunpack.c.h.b16 %v129
    %v305 = vunpack.c.l.b16 %v130
    %v306 = vunpack.c.l.b16 %v131
    %v307 = vunpack.c.h.b16 %v131
    %v308 = vunpack.c.l.b16 %v132
    %v309 = vpack.c.b16 %v264, %v261
    %v310 = vpack.c.b16 %v265, %v262
    %v311 = vpack.c.b16 %v266, %v263
    %v312 = vpack.c.b16 %v270, %v267
    %v313 = vpack.c.b16 %v271, %v268
    %v314 = vpack.c.b16 %v272, %v269
    %v315 = vpack.c.b16 %v276, %v273
    %v316 = vpack.c.b16 %v277, %v274
    %v317 = vpack.c.b16 %v278, %v275
    %v318 = vpack.c.b16 %v282, %v279
    %v319 = vpack.c.b16 %v283, %v280
    %v320 = vpack.c.b16 %v284, %v281
    %v321 = vpack.c.b16 %v288, %v285
    %v322 = vpack.c.b16 %v289, %v286
    %v323 = vpack.c.b16 %v290, %v287
    %v324 = vpack.c.b16 %v294, %v291
    %v325 = vpack.c.b16 %v295, %v292
    %v326 = vpack.c.b16 %v296, %v293
    %v327 = vpack.c.b16 %v300, %v297
    %v328 = vpack.c.b16 %v301, %v298
    %v329 = vpack.c.b16 %v302, %v299
    %v330 = vpack.c.b16 %v306, %v303
    %v331 = vpack.c.b16 %v307, %v304
    %v332 = vpack.c.b16 %v308, %v305
    %357 = vmatprep.subr.bf16.mxu0 %v310
    %358 = vmatpush1.bf16.msra.mxu0 %v309
    %359 = vmatprep.subr.bf16.mxu0 %v313
    %360 = vmatpush1.bf16.msra.mxu0 %v312
    %361 = vmatprep.subr.bf16.mxu0 %v316
    %362 = vmatpush1.bf16.msra.mxu0 %v315
    %363 = vmatprep.subr.bf16.mxu0 %v319
    %364 = vmatpush1.bf16.msra.mxu0 %v318
    %365 = vmatprep.subr.bf16.mxu0 %v322
    %366 = vmatpush1.bf16.msra.mxu0 %v321
    %367 = vmatprep.subr.bf16.mxu0 %v325
    %368 = vmatpush1.bf16.msra.mxu0 %v324
    %369 = vmatprep.subr.bf16.mxu0 %v328
    %370 = vmatpush1.bf16.msra.mxu0 %v327
    %371 = vmatprep.subr.bf16.mxu0 %v331
    %372 = vmatpush1.bf16.msra.mxu0 %v330
    %373 = vmatprep.subr.bf16.mxu0 0
    %374 = vmatpush1.bf16.msra.mxu0 0
    %375 = vmatprep.subr.bf16.mxu0 0
    %376 = vmatpush1.bf16.msra.mxu0 0
    %377 = vmatprep.subr.bf16.mxu0 0
    %378 = vmatpush1.bf16.msra.mxu0 0
    %379 = vmatprep.subr.bf16.mxu0 0
    %380 = vmatpush1.bf16.msra.mxu0 0
    %381 = vmatprep.subr.bf16.mxu0 0
    %382 = vmatpush1.bf16.msra.mxu0 0
    %383 = vmatprep.subr.bf16.mxu0 0
    %384 = vmatpush1.bf16.msra.mxu0 0
    %385 = vmatprep.subr.bf16.mxu0 0
    %386 = vmatpush1.bf16.msra.mxu0 0
    %387 = vmatprep.subr.bf16.mxu0 0
    %388 = vmatpush1.bf16.msra.mxu0 0
    %389 = vmatprep.mubr.bf16.mxu0 0
    %390 = vmatmul.mubr.bf16.gmra.mrb[0].mxu0 %v197
    %v391 = vpop.f32.mrb[0].mxu0
    %v392 = vadd.f32 0.0, %v391
    %v393 = vpop.f32.mrb[0].mxu0
    %v394 = vadd.f32 0.0, %v393
    %v395 = vpop.f32.mrb[0].mxu0
    %v396 = vadd.f32 0.0, %v395
    %v397 = vpop.f32.mrb[0].mxu0
    %v398 = vadd.f32 0.0, %v397
    %399 = vmatprep.mubr.bf16.mxu0 0
    %400 = vmatmul.mubr.bf16.gmra.mrb[0].mxu0 %v198
    %v401 = vpop.f32.mrb[0].mxu0
    %v402 = vadd.f32 0.0, %v401
    %v403 = vpop.f32.mrb[0].mxu0
    %v404 = vadd.f32 0.0, %v403
    %v405 = vpop.f32.mrb[0].mxu0
    %v406 = vadd.f32 0.0, %v405
    %v407 = vpop.f32.mrb[0].mxu0
    %v408 = vadd.f32 0.0, %v407
    %409 = vmatprep.mubr.bf16.mxu0 0
    %410 = vmatmul.mubr.bf16.gmra.mrb[0].mxu0 %v199
    %v411 = vpop.f32.mrb[0].mxu0
    %v412 = vadd.f32 0.0, %v411
    %v413 = vpop.f32.mrb[0].mxu0
    %v414 = vadd.f32 0.0, %v413
    %v415 = vpop.f32.mrb[0].mxu0
    %v416 = vadd.f32 0.0, %v415
    %v417 = vpop.f32.mrb[0].mxu0
    %v418 = vadd.f32 0.0, %v417
    %419 = vmatprep.mubr.bf16.mxu0 0
    %420 = vmatmul.mubr.bf16.gmra.mrb[0].mxu0 %v200
    %v421 = vpop.f32.mrb[0].mxu0
    %v422 = vadd.f32 0.0, %v421
    %v423 = vpop.f32.mrb[0].mxu0
    %v424 = vadd.f32 0.0, %v423
    %v425 = vpop.f32.mrb[0].mxu0
    %v426 = vadd.f32 0.0, %v425
    %v427 = vpop.f32.mrb[0].mxu0
    %v428 = vadd.f32 0.0, %v427
    %429 = vmatprep.mubr.bf16.mxu0 0
    %430 = vmatmul.mubr.bf16.gmra.mrb[0].mxu0 %v201
    %v431 = vpop.f32.mrb[0].mxu0
    %v432 = vadd.f32 0.0, %v431
    %v433 = vpop.f32.mrb[0].mxu0
    %v434 = vadd.f32 0.0, %v433
    %v435 = vpop.f32.mrb[0].mxu0
    %v436 = vadd.f32 0.0, %v435
    %v437 = vpop.f32.mrb[0].mxu0
    %v438 = vadd.f32 0.0, %v437
    %439 = vmatprep.mubr.bf16.mxu0 0
    %440 = vmatmul.mubr.bf16.gmra.mrb[0].mxu0 %v202
    %v441 = vpop.f32.mrb[0].mxu0
    %v442 = vadd.f32 0.0, %v441
    %v443 = vpop.f32.mrb[0].mxu0
    %v444 = vadd.f32 0.0, %v443
    %v445 = vpop.f32.mrb[0].mxu0
    %v446 = vadd.f32 0.0, %v445
    %v447 = vpop.f32.mrb[0].mxu0
    %v448 = vadd.f32 0.0, %v447
    %449 = vmatprep.mubr.bf16.mxu0 0
    %450 = vmatmul.mubr.bf16.gmra.mrb[0].mxu0 %v203
    %v451 = vpop.f32.mrb[0].mxu0
    %v452 = vadd.f32 0.0, %v451
    %v453 = vpop.f32.mrb[0].mxu0
    %v454 = vadd.f32 0.0, %v453
    %v455 = vpop.f32.mrb[0].mxu0
    %v456 = vadd.f32 0.0, %v455
    %v457 = vpop.f32.mrb[0].mxu0
    %v458 = vadd.f32 0.0, %v457
    %459 = vmatprep.mubr.bf16.mxu0 0
    %460 = vmatmul.mubr.bf16.gmra.mrb[0].mxu0 %v204
    %v461 = vpop.f32.mrb[0].mxu0
    %v462 = vadd.f32 0.0, %v461
    %v463 = vpop.f32.mrb[0].mxu0
    %v464 = vadd.f32 0.0, %v463
    %v465 = vpop.f32.mrb[0].mxu0
    %v466 = vadd.f32 0.0, %v465
    %v467 = vpop.f32.mrb[0].mxu0
    %v468 = vadd.f32 0.0, %v467
    %469 = vmatprep.mubr.bf16.mxu0 0
    %470 = vmatmul.mubr.bf16.gmra.mrb[0].mxu0 %v205
    %v471 = vpop.f32.mrb[0].mxu0
    %v472 = vadd.f32 0.0, %v471
    %v473 = vpop.f32.mrb[0].mxu0
    %v474 = vadd.f32 0.0, %v473
    %v475 = vpop.f32.mrb[0].mxu0
    %v476 = vadd.f32 0.0, %v475
    %v477 = vpop.f32.mrb[0].mxu0
    %v478 = vadd.f32 0.0, %v477
    %479 = vmatprep.mubr.bf16.mxu0 0
    %480 = vmatmul.mubr.bf16.gmra.mrb[0].mxu0 %v206
    %v481 = vpop.f32.mrb[0].mxu0
    %v482 = vadd.f32 0.0, %v481
    %v483 = vpop.f32.mrb[0].mxu0
    %v484 = vadd.f32 0.0, %v483
    %v485 = vpop.f32.mrb[0].mxu0
    %v486 = vadd.f32 0.0, %v485
    %v487 = vpop.f32.mrb[0].mxu0
    %v488 = vadd.f32 0.0, %v487
    %489 = vmatprep.mubr.bf16.mxu0 0
    %490 = vmatmul.mubr.bf16.gmra.mrb[0].mxu0 %v207
    %v491 = vpop.f32.mrb[0].mxu0
    %v492 = vadd.f32 0.0, %v491
    %v493 = vpop.f32.mrb[0].mxu0
    %v494 = vadd.f32 0.0, %v493
    %v495 = vpop.f32.mrb[0].mxu0
    %v496 = vadd.f32 0.0, %v495
    %v497 = vpop.f32.mrb[0].mxu0
    %v498 = vadd.f32 0.0, %v497
    %499 = vmatprep.mubr.bf16.mxu0 0
    %500 = vmatmul.mubr.bf16.gmra.mrb[0].mxu0 %v208
    %v501 = vpop.f32.mrb[0].mxu0
    %v502 = vadd.f32 0.0, %v501
    %v503 = vpop.f32.mrb[0].mxu0
    %v504 = vadd.f32 0.0, %v503
    %v505 = vpop.f32.mrb[0].mxu0
    %v506 = vadd.f32 0.0, %v505
    %v507 = vpop.f32.mrb[0].mxu0
    %v508 = vadd.f32 0.0, %v507
    %509 = vmatprep.mubr.bf16.mxu0 0
    %510 = vmatmul.mubr.bf16.gmra.mrb[0].mxu0 %v209
    %v511 = vpop.f32.mrb[0].mxu0
    %v512 = vadd.f32 0.0, %v511
    %v513 = vpop.f32.mrb[0].mxu0
    %v514 = vadd.f32 0.0, %v513
    %v515 = vpop.f32.mrb[0].mxu0
    %v516 = vadd.f32 0.0, %v515
    %v517 = vpop.f32.mrb[0].mxu0
    %v518 = vadd.f32 0.0, %v517
    %519 = vmatprep.mubr.bf16.mxu0 0
    %520 = vmatmul.mubr.bf16.gmra.mrb[0].mxu0 %v210
    %v521 = vpop.f32.mrb[0].mxu0
    %v522 = vadd.f32 0.0, %v521
    %v523 = vpop.f32.mrb[0].mxu0
    %v524 = vadd.f32 0.0, %v523
    %v525 = vpop.f32.mrb[0].mxu0
    %v526 = vadd.f32 0.0, %v525
    %v527 = vpop.f32.mrb[0].mxu0
    %v528 = vadd.f32 0.0, %v527
    %529 = vmatprep.mubr.bf16.mxu0 0
    %530 = vmatmul.mubr.bf16.gmra.mrb[0].mxu0 %v211
    %v531 = vpop.f32.mrb[0].mxu0
    %v532 = vadd.f32 0.0, %v531
    %v533 = vpop.f32.mrb[0].mxu0
    %v534 = vadd.f32 0.0, %v533
    %v535 = vpop.f32.mrb[0].mxu0
    %v536 = vadd.f32 0.0, %v535
    %v537 = vpop.f32.mrb[0].mxu0
    %v538 = vadd.f32 0.0, %v537
    %539 = vmatprep.mubr.bf16.mxu0 0
    %540 = vmatmul.mubr.bf16.gmra.mrb[0].mxu0 %v212
    %v541 = vpop.f32.mrb[0].mxu0
    %v542 = vadd.f32 0.0, %v541
    %v543 = vpop.f32.mrb[0].mxu0
    %v544 = vadd.f32 0.0, %v543
    %v545 = vpop.f32.mrb[0].mxu0
    %v546 = vadd.f32 0.0, %v545
    %v547 = vpop.f32.mrb[0].mxu0
    %v548 = vadd.f32 0.0, %v547
    %549 = vdwg.mxu0
    %550 = vmatprep.subr.bf16.mxu0 0
    %551 = vmatpush1.bf16.msra.mxu0 %v311
    %552 = vmatprep.subr.bf16.mxu0 0
    %553 = vmatpush1.bf16.msra.mxu0 %v314
    %554 = vmatprep.subr.bf16.mxu0 0
    %555 = vmatpush1.bf16.msra.mxu0 %v317
    %556 = vmatprep.subr.bf16.mxu0 0
    %557 = vmatpush1.bf16.msra.mxu0 %v320
    %558 = vmatprep.subr.bf16.mxu0 0
    %559 = vmatpush1.bf16.msra.mxu0 %v323
    %560 = vmatprep.subr.bf16.mxu0 0
    %561 = vmatpush1.bf16.msra.mxu0 %v326
    %562 = vmatprep.subr.bf16.mxu0 0
    %563 = vmatpush1.bf16.msra.mxu0 %v329
    %564 = vmatprep.subr.bf16.mxu0 0
    %565 = vmatpush1.bf16.msra.mxu0 %v332
    %566 = vmatprep.subr.bf16.mxu0 0
    %567 = vmatpush1.bf16.msra.mxu0 0
    %568 = vmatprep.subr.bf16.mxu0 0
    %569 = vmatpush1.bf16.msra.mxu0 0
    %570 = vmatprep.subr.bf16.mxu0 0
    %571 = vmatpush1.bf16.msra.mxu0 0
    %572 = vmatprep.subr.bf16.mxu0 0
    %573 = vmatpush1.bf16.msra.mxu0 0
    %574 = vmatprep.subr.bf16.mxu0 0
    %575 = vmatpush1.bf16.msra.mxu0 0
    %576 = vmatprep.subr.bf16.mxu0 0
    %577 = vmatpush1.bf16.msra.mxu0 0
    %578 = vmatprep.subr.bf16.mxu0 0
    %579 = vmatpush1.bf16.msra.mxu0 0
    %580 = vmatprep.subr.bf16.mxu0 0
    %581 = vmatpush1.bf16.msra.mxu0 0
    %582 = vmatprep.mubr.bf16.mxu0 0
    %583 = vmatmul.mubr.bf16.gmra.mrb[0].mxu0 %v197
    %v584 = vpop.f32.mrb[0].mxu0
    %v585 = vadd.f32 0.0, %v584
    %v586 = vpop.f32.mrb[0].mxu0
    %v587 = vpop.f32.mrb[0].mxu0
    %v588 = vadd.f32 0.0, %v587
    %v589 = vpop.f32.mrb[0].mxu0
    %590 = vmatprep.mubr.bf16.mxu0 0
    %591 = vmatmul.mubr.bf16.gmra.mrb[0].mxu0 %v198
    %v592 = vpop.f32.mrb[0].mxu0
    %v593 = vadd.f32 0.0, %v592
    %v594 = vpop.f32.mrb[0].mxu0
    %v595 = vpop.f32.mrb[0].mxu0
    %v596 = vadd.f32 0.0, %v595
    %v597 = vpop.f32.mrb[0].mxu0
    %598 = vmatprep.mubr.bf16.mxu0 0
    %599 = vmatmul.mubr.bf16.gmra.mrb[0].mxu0 %v199
    %v600 = vpop.f32.mrb[0].mxu0
    %v601 = vadd.f32 0.0, %v600
    %v602 = vpop.f32.mrb[0].mxu0
    %v603 = vpop.f32.mrb[0].mxu0
    %v604 = vadd.f32 0.0, %v603
    %v605 = vpop.f32.mrb[0].mxu0
    %606 = vmatprep.mubr.bf16.mxu0 0
    %607 = vmatmul.mubr.bf16.gmra.mrb[0].mxu0 %v200
    %v608 = vpop.f32.mrb[0].mxu0
    %v609 = vadd.f32 0.0, %v608
    %v610 = vpop.f32.mrb[0].mxu0
    %v611 = vpop.f32.mrb[0].mxu0
    %v612 = vadd.f32 0.0, %v611
    %v613 = vpop.f32.mrb[0].mxu0
    %614 = vmatprep.mubr.bf16.mxu0 0
    %615 = vmatmul.mubr.bf16.gmra.mrb[0].mxu0 %v201
    %v616 = vpop.f32.mrb[0].mxu0
    %v617 = vadd.f32 0.0, %v616
    %v618 = vpop.f32.mrb[0].mxu0
    %v619 = vpop.f32.mrb[0].mxu0
    %v620 = vadd.f32 0.0, %v619
    %v621 = vpop.f32.mrb[0].mxu0
    %622 = vmatprep.mubr.bf16.mxu0 0
    %623 = vmatmul.mubr.bf16.gmra.mrb[0].mxu0 %v202
    %v624 = vpop.f32.mrb[0].mxu0
    %v625 = vadd.f32 0.0, %v624
    %v626 = vpop.f32.mrb[0].mxu0
    %v627 = vpop.f32.mrb[0].mxu0
    %v628 = vadd.f32 0.0, %v627
    %v629 = vpop.f32.mrb[0].mxu0
    %630 = vmatprep.mubr.bf16.mxu0 0
    %631 = vmatmul.mubr.bf16.gmra.mrb[0].mxu0 %v203
    %v632 = vpop.f32.mrb[0].mxu0
    %v633 = vadd.f32 0.0, %v632
    %v634 = vpop.f32.mrb[0].mxu0
    %v635 = vpop.f32.mrb[0].mxu0
    %v636 = vadd.f32 0.0, %v635
    %v637 = vpop.f32.mrb[0].mxu0
    %638 = vmatprep.mubr.bf16.mxu0 0
    %639 = vmatmul.mubr.bf16.gmra.mrb[0].mxu0 %v204
    %v640 = vpop.f32.mrb[0].mxu0
    %v641 = vadd.f32 0.0, %v640
    %v642 = vpop.f32.mrb[0].mxu0
    %v643 = vpop.f32.mrb[0].mxu0
    %v644 = vadd.f32 0.0, %v643
    %v645 = vpop.f32.mrb[0].mxu0
    %646 = vmatprep.mubr.bf16.mxu0 0
    %647 = vmatmul.mubr.bf16.gmra.mrb[0].mxu0 %v205
    %v648 = vpop.f32.mrb[0].mxu0
    %v649 = vadd.f32 0.0, %v648
    %v650 = vpop.f32.mrb[0].mxu0
    %v651 = vpop.f32.mrb[0].mxu0
    %v652 = vadd.f32 0.0, %v651
    %v653 = vpop.f32.mrb[0].mxu0
    %654 = vmatprep.mubr.bf16.mxu0 0
    %655 = vmatmul.mubr.bf16.gmra.mrb[0].mxu0 %v206
    %v656 = vpop.f32.mrb[0].mxu0
    %v657 = vadd.f32 0.0, %v656
    %v658 = vpop.f32.mrb[0].mxu0
    %v659 = vpop.f32.mrb[0].mxu0
    %v660 = vadd.f32 0.0, %v659
    %v661 = vpop.f32.mrb[0].mxu0
    %662 = vmatprep.mubr.bf16.mxu0 0
    %663 = vmatmul.mubr.bf16.gmra.mrb[0].mxu0 %v207
    %v664 = vpop.f32.mrb[0].mxu0
    %v665 = vadd.f32 0.0, %v664
    %v666 = vpop.f32.mrb[0].mxu0
    %v667 = vpop.f32.mrb[0].mxu0
    %v668 = vadd.f32 0.0, %v667
    %v669 = vpop.f32.mrb[0].mxu0
    %670 = vmatprep.mubr.bf16.mxu0 0
    %671 = vmatmul.mubr.bf16.gmra.mrb[0].mxu0 %v208
    %v672 = vpop.f32.mrb[0].mxu0
    %v673 = vadd.f32 0.0, %v672
    %v674 = vpop.f32.mrb[0].mxu0
    %v675 = vpop.f32.mrb[0].mxu0
    %v676 = vadd.f32 0.0, %v675
    %v677 = vpop.f32.mrb[0].mxu0
    %678 = vmatprep.mubr.bf16.mxu0 0
    %679 = vmatmul.mubr.bf16.gmra.mrb[0].mxu0 %v209
    %v680 = vpop.f32.mrb[0].mxu0
    %v681 = vadd.f32 0.0, %v680
    %v682 = vpop.f32.mrb[0].mxu0
    %v683 = vpop.f32.mrb[0].mxu0
    %v684 = vadd.f32 0.0, %v683
    %v685 = vpop.f32.mrb[0].mxu0
    %686 = vmatprep.mubr.bf16.mxu0 0
    %687 = vmatmul.mubr.bf16.gmra.mrb[0].mxu0 %v210
    %v688 = vpop.f32.mrb[0].mxu0
    %v689 = vadd.f32 0.0, %v688
    %v690 = vpop.f32.mrb[0].mxu0
    %v691 = vpop.f32.mrb[0].mxu0
    %v692 = vadd.f32 0.0, %v691
    %v693 = vpop.f32.mrb[0].mxu0
    %694 = vmatprep.mubr.bf16.mxu0 0
    %695 = vmatmul.mubr.bf16.gmra.mrb[0].mxu0 %v211
    %v696 = vpop.f32.mrb[0].mxu0
    %v697 = vadd.f32 0.0, %v696
    %v698 = vpop.f32.mrb[0].mxu0
    %v699 = vpop.f32.mrb[0].mxu0
    %v700 = vadd.f32 0.0, %v699
    %v701 = vpop.f32.mrb[0].mxu0
    %702 = vmatprep.mubr.bf16.mxu0 0
    %703 = vmatmul.mubr.bf16.gmra.mrb[0].mxu0 %v212
    %v704 = vpop.f32.mrb[0].mxu0
    %v705 = vadd.f32 0.0, %v704
    %v706 = vpop.f32.mrb[0].mxu0
    %v707 = vpop.f32.mrb[0].mxu0
    %v708 = vadd.f32 0.0, %v707
    %v709 = vpop.f32.mrb[0].mxu0
    %710 = vdwg.mxu0
    %v711 = vld [vmem:[%s2] sm:$0xff]
    %v712 = vld [vmem:[%s2 + $0x8] sm:$0xf]
    %v713 = vld [vmem:[%s2 + $0xc] sm:$0xff]
    %v714 = vld [vmem:[%s2 + $0x14] sm:$0xf]
    %v715 = vld [vmem:[%s2 + $0x18] sm:$0xff]
    %v716 = vld [vmem:[%s2 + $0x20] sm:$0xf]
    %v717 = vld [vmem:[%s2 + $0x24] sm:$0xff]
    %v718 = vld [vmem:[%s2 + $0x2c] sm:$0xf]
    %v719 = vld [vmem:[%s2 + $0x30] sm:$0xff]
    %v720 = vld [vmem:[%s2 + $0x38] sm:$0xf]
    %v721 = vld [vmem:[%s2 + $0x3c] sm:$0xff]
    %v722 = vld [vmem:[%s2 + $0x44] sm:$0xf]
    %v723 = vld [vmem:[%s2 + $0x48] sm:$0xff]
    %v724 = vld [vmem:[%s2 + $0x50] sm:$0xf]
    %v725 = vld [vmem:[%s2 + $0x54] sm:$0xff]
    %v726 = vld [vmem:[%s2 + $0x5c] sm:$0xf]
    %v727 = vld [vmem:[%s2 + $0x60] sm:$0xff]
    %v728 = vld [vmem:[%s2 + $0x68] sm:$0xf]
    %v729 = vld [vmem:[%s2 + $0x6c] sm:$0xff]
    %v730 = vld [vmem:[%s2 + $0x74] sm:$0xf]
    %v731 = vld [vmem:[%s2 + $0x78] sm:$0xff]
    %v732 = vld [vmem:[%s2 + $0x80] sm:$0xf]
    %v733 = vld [vmem:[%s2 + $0x84] sm:$0xff]
    %v734 = vld [vmem:[%s2 + $0x8c] sm:$0xf]
    %v735 = vld [vmem:[%s2 + $0x90] sm:$0xff]
    %v736 = vld [vmem:[%s2 + $0x98] sm:$0xf]
    %v737 = vld [vmem:[%s2 + $0x9c] sm:$0xff]
    %v738 = vld [vmem:[%s2 + $0xa4] sm:$0xf]
    %v739 = vld [vmem:[%s2 + $0xa8] sm:$0xff]
    %v740 = vld [vmem:[%s2 + $0xb0] sm:$0xf]
    %v741 = vld [vmem:[%s2 + $0xb4] sm:$0xff]
    %v742 = vld [vmem:[%s2 + $0xbc] sm:$0xf]
    %v775 = vunpack.c.l.b16 %v711
    %v776 = vunpack.c.h.b16 %v711
    %v777 = vunpack.c.l.b16 %v712
    %v778 = vunpack.c.l.b16 %v713
    %v779 = vunpack.c.h.b16 %v713
    %v780 = vunpack.c.l.b16 %v714
    %v781 = vunpack.c.l.b16 %v715
    %v782 = vunpack.c.h.b16 %v715
    %v783 = vunpack.c.l.b16 %v716
    %v784 = vunpack.c.l.b16 %v717
    %v785 = vunpack.c.h.b16 %v717
    %v786 = vunpack.c.l.b16 %v718
    %v787 = vunpack.c.l.b16 %v719
    %v788 = vunpack.c.h.b16 %v719
    %v789 = vunpack.c.l.b16 %v720
    %v790 = vunpack.c.l.b16 %v721
    %v791 = vunpack.c.h.b16 %v721
    %v792 = vunpack.c.l.b16 %v722
    %v793 = vunpack.c.l.b16 %v723
    %v794 = vunpack.c.h.b16 %v723
    %v795 = vunpack.c.l.b16 %v724
    %v796 = vunpack.c.l.b16 %v725
    %v797 = vunpack.c.h.b16 %v725
    %v798 = vunpack.c.l.b16 %v726
    %v799 = vunpack.c.l.b16 %v727
    %v800 = vunpack.c.h.b16 %v727
    %v801 = vunpack.c.l.b16 %v728
    %v802 = vunpack.c.l.b16 %v729
    %v803 = vunpack.c.h.b16 %v729
    %v804 = vunpack.c.l.b16 %v730
    %v805 = vunpack.c.l.b16 %v731
    %v806 = vunpack.c.h.b16 %v731
    %v807 = vunpack.c.l.b16 %v732
    %v808 = vunpack.c.l.b16 %v733
    %v809 = vunpack.c.h.b16 %v733
    %v810 = vunpack.c.l.b16 %v734
    %v811 = vunpack.c.l.b16 %v735
    %v812 = vunpack.c.h.b16 %v735
    %v813 = vunpack.c.l.b16 %v736
    %v814 = vunpack.c.l.b16 %v737
    %v815 = vunpack.c.h.b16 %v737
    %v816 = vunpack.c.l.b16 %v738
    %v817 = vunpack.c.l.b16 %v739
    %v818 = vunpack.c.h.b16 %v739
    %v819 = vunpack.c.l.b16 %v740
    %v820 = vunpack.c.l.b16 %v741
    %v821 = vunpack.c.h.b16 %v741
    %v822 = vunpack.c.l.b16 %v742
    %v823 = vpack.c.b16 %v778, %v775
    %v824 = vpack.c.b16 %v779, %v776
    %v825 = vpack.c.b16 %v780, %v777
    %v826 = vpack.c.b16 %v784, %v781
    %v827 = vpack.c.b16 %v785, %v782
    %v828 = vpack.c.b16 %v786, %v783
    %v829 = vpack.c.b16 %v790, %v787
    %v830 = vpack.c.b16 %v791, %v788
    %v831 = vpack.c.b16 %v792, %v789
    %v832 = vpack.c.b16 %v796, %v793
    %v833 = vpack.c.b16 %v797, %v794
    %v834 = vpack.c.b16 %v798, %v795
    %v835 = vpack.c.b16 %v802, %v799
    %v836 = vpack.c.b16 %v803, %v800
    %v837 = vpack.c.b16 %v804, %v801
    %v838 = vpack.c.b16 %v808, %v805
    %v839 = vpack.c.b16 %v809, %v806
    %v840 = vpack.c.b16 %v810, %v807
    %v841 = vpack.c.b16 %v814, %v811
    %v842 = vpack.c.b16 %v815, %v812
    %v843 = vpack.c.b16 %v816, %v813
    %v844 = vpack.c.b16 %v820, %v817
    %v845 = vpack.c.b16 %v821, %v818
    %v846 = vpack.c.b16 %v822, %v819
    %871 = vmatprep.subr.bf16.mxu0 %v824
    %872 = vmatpush1.bf16.msra.mxu0 %v823
    %873 = vmatprep.subr.bf16.mxu0 %v827
    %874 = vmatpush1.bf16.msra.mxu0 %v826
    %875 = vmatprep.subr.bf16.mxu0 %v830
    %876 = vmatpush1.bf16.msra.mxu0 %v829
    %877 = vmatprep.subr.bf16.mxu0 %v833
    %878 = vmatpush1.bf16.msra.mxu0 %v832
    %879 = vmatprep.subr.bf16.mxu0 %v836
    %880 = vmatpush1.bf16.msra.mxu0 %v835
    %881 = vmatprep.subr.bf16.mxu0 %v839
    %882 = vmatpush1.bf16.msra.mxu0 %v838
    %883 = vmatprep.subr.bf16.mxu0 %v842
    %884 = vmatpush1.bf16.msra.mxu0 %v841
    %885 = vmatprep.subr.bf16.mxu0 %v845
    %886 = vmatpush1.bf16.msra.mxu0 %v844
    %887 = vmatprep.subr.bf16.mxu0 0
    %888 = vmatpush1.bf16.msra.mxu0 0
    %889 = vmatprep.subr.bf16.mxu0 0
    %890 = vmatpush1.bf16.msra.mxu0 0
    %891 = vmatprep.subr.bf16.mxu0 0
    %892 = vmatpush1.bf16.msra.mxu0 0
    %893 = vmatprep.subr.bf16.mxu0 0
    %894 = vmatpush1.bf16.msra.mxu0 0
    %895 = vmatprep.subr.bf16.mxu0 0
    %896 = vmatpush1.bf16.msra.mxu0 0
    %897 = vmatprep.subr.bf16.mxu0 0
    %898 = vmatpush1.bf16.msra.mxu0 0
    %899 = vmatprep.subr.bf16.mxu0 0
    %900 = vmatpush1.bf16.msra.mxu0 0
    %901 = vmatprep.subr.bf16.mxu0 0
    %902 = vmatpush1.bf16.msra.mxu0 0
    %903 = vmatprep.mubr.bf16.mxu0 0
    %904 = vmatmul.mubr.bf16.gmra.mrb[0].mxu0 %v197
    %v905 = vpop.f32.mrb[0].mxu0
    %v906 = vadd.f32 0.0, %v905
    %v907 = vpop.f32.mrb[0].mxu0
    %v908 = vadd.f32 0.0, %v907
    %v909 = vpop.f32.mrb[0].mxu0
    %v910 = vadd.f32 0.0, %v909
    %v911 = vpop.f32.mrb[0].mxu0
    %v912 = vadd.f32 0.0, %v911
    %913 = vmatprep.mubr.bf16.mxu0 0
    %914 = vmatmul.mubr.bf16.gmra.mrb[0].mxu0 %v198
    %v915 = vpop.f32.mrb[0].mxu0
    %v916 = vadd.f32 0.0, %v915
    %v917 = vpop.f32.mrb[0].mxu0
    %v918 = vadd.f32 0.0, %v917
    %v919 = vpop.f32.mrb[0].mxu0
    %v920 = vadd.f32 0.0, %v919
    %v921 = vpop.f32.mrb[0].mxu0
    %v922 = vadd.f32 0.0, %v921
    %923 = vmatprep.mubr.bf16.mxu0 0
    %924 = vmatmul.mubr.bf16.gmra.mrb[0].mxu0 %v199
    %v925 = vpop.f32.mrb[0].mxu0
    %v926 = vadd.f32 0.0, %v925
    %v927 = vpop.f32.mrb[0].mxu0
    %v928 = vadd.f32 0.0, %v927
    %v929 = vpop.f32.mrb[0].mxu0
    %v930 = vadd.f32 0.0, %v929
    %v931 = vpop.f32.mrb[0].mxu0
    %v932 = vadd.f32 0.0, %v931
    %933 = vmatprep.mubr.bf16.mxu0 0
    %934 = vmatmul.mubr.bf16.gmra.mrb[0].mxu0 %v200
    %v935 = vpop.f32.mrb[0].mxu0
    %v936 = vadd.f32 0.0, %v935
    %v937 = vpop.f32.mrb[0].mxu0
    %v938 = vadd.f32 0.0, %v937
    %v939 = vpop.f32.mrb[0].mxu0
    %v940 = vadd.f32 0.0, %v939
    %v941 = vpop.f32.mrb[0].mxu0
    %v942 = vadd.f32 0.0, %v941
    %943 = vmatprep.mubr.bf16.mxu0 0
    %944 = vmatmul.mubr.bf16.gmra.mrb[0].mxu0 %v201
    %v945 = vpop.f32.mrb[0].mxu0
    %v946 = vadd.f32 0.0, %v945
    %v947 = vpop.f32.mrb[0].mxu0
    %v948 = vadd.f32 0.0, %v947
    %v949 = vpop.f32.mrb[0].mxu0
    %v950 = vadd.f32 0.0, %v949
    %v951 = vpop.f32.mrb[0].mxu0
    %v952 = vadd.f32 0.0, %v951
    %953 = vmatprep.mubr.bf16.mxu0 0
    %954 = vmatmul.mubr.bf16.gmra.mrb[0].mxu0 %v202
    %v955 = vpop.f32.mrb[0].mxu0
    %v956 = vadd.f32 0.0, %v955
    %v957 = vpop.f32.mrb[0].mxu0
    %v958 = vadd.f32 0.0, %v957
    %v959 = vpop.f32.mrb[0].mxu0
    %v960 = vadd.f32 0.0, %v959
    %v961 = vpop.f32.mrb[0].mxu0
    %v962 = vadd.f32 0.0, %v961
    %963 = vmatprep.mubr.bf16.mxu0 0
    %964 = vmatmul.mubr.bf16.gmra.mrb[0].mxu0 %v203
    %v965 = vpop.f32.mrb[0].mxu0
    %v966 = vadd.f32 0.0, %v965
    %v967 = vpop.f32.mrb[0].mxu0
    %v968 = vadd.f32 0.0, %v967
    %v969 = vpop.f32.mrb[0].mxu0
    %v970 = vadd.f32 0.0, %v969
    %v971 = vpop.f32.mrb[0].mxu0
    %v972 = vadd.f32 0.0, %v971
    %973 = vmatprep.mubr.bf16.mxu0 0
    %974 = vmatmul.mubr.bf16.gmra.mrb[0].mxu0 %v204
    %v975 = vpop.f32.mrb[0].mxu0
    %v976 = vadd.f32 0.0, %v975
    %v977 = vpop.f32.mrb[0].mxu0
    %v978 = vadd.f32 0.0, %v977
    %v979 = vpop.f32.mrb[0].mxu0
    %v980 = vadd.f32 0.0, %v979
    %v981 = vpop.f32.mrb[0].mxu0
    %v982 = vadd.f32 0.0, %v981
    %983 = vmatprep.mubr.bf16.mxu0 0
    %984 = vmatmul.mubr.bf16.gmra.mrb[0].mxu0 %v205
    %v985 = vpop.f32.mrb[0].mxu0
    %v986 = vadd.f32 0.0, %v985
    %v987 = vpop.f32.mrb[0].mxu0
    %v988 = vadd.f32 0.0, %v987
    %v989 = vpop.f32.mrb[0].mxu0
    %v990 = vadd.f32 0.0, %v989
    %v991 = vpop.f32.mrb[0].mxu0
    %v992 = vadd.f32 0.0, %v991
    %993 = vmatprep.mubr.bf16.mxu0 0
    %994 = vmatmul.mubr.bf16.gmra.mrb[0].mxu0 %v206
    %v995 = vpop.f32.mrb[0].mxu0
    %v996 = vadd.f32 0.0, %v995
    %v997 = vpop.f32.mrb[0].mxu0
    %v998 = vadd.f32 0.0, %v997
    %v999 = vpop.f32.mrb[0].mxu0
    %v1000 = vadd.f32 0.0, %v999
    %v1001 = vpop.f32.mrb[0].mxu0
    %v1002 = vadd.f32 0.0, %v1001
    %1003 = vmatprep.mubr.bf16.mxu0 0
    %1004 = vmatmul.mubr.bf16.gmra.mrb[0].mxu0 %v207
    %v1005 = vpop.f32.mrb[0].mxu0
    %v1006 = vadd.f32 0.0, %v1005
    %v1007 = vpop.f32.mrb[0].mxu0
    %v1008 = vadd.f32 0.0, %v1007
    %v1009 = vpop.f32.mrb[0].mxu0
    %v1010 = vadd.f32 0.0, %v1009
    %v1011 = vpop.f32.mrb[0].mxu0
    %v1012 = vadd.f32 0.0, %v1011
    %1013 = vmatprep.mubr.bf16.mxu0 0
    %1014 = vmatmul.mubr.bf16.gmra.mrb[0].mxu0 %v208
    %v1015 = vpop.f32.mrb[0].mxu0
    %v1016 = vadd.f32 0.0, %v1015
    %v1017 = vpop.f32.mrb[0].mxu0
    %v1018 = vadd.f32 0.0, %v1017
    %v1019 = vpop.f32.mrb[0].mxu0
    %v1020 = vadd.f32 0.0, %v1019
    %v1021 = vpop.f32.mrb[0].mxu0
    %v1022 = vadd.f32 0.0, %v1021
    %1023 = vmatprep.mubr.bf16.mxu0 0
    %1024 = vmatmul.mubr.bf16.gmra.mrb[0].mxu0 %v209
    %v1025 = vpop.f32.mrb[0].mxu0
    %v1026 = vadd.f32 0.0, %v1025
    %v1027 = vpop.f32.mrb[0].mxu0
    %v1028 = vadd.f32 0.0, %v1027
    %v1029 = vpop.f32.mrb[0].mxu0
    %v1030 = vadd.f32 0.0, %v1029
    %v1031 = vpop.f32.mrb[0].mxu0
    %v1032 = vadd.f32 0.0, %v1031
    %1033 = vmatprep.mubr.bf16.mxu0 0
    %1034 = vmatmul.mubr.bf16.gmra.mrb[0].mxu0 %v210
    %v1035 = vpop.f32.mrb[0].mxu0
    %v1036 = vadd.f32 0.0, %v1035
    %v1037 = vpop.f32.mrb[0].mxu0
    %v1038 = vadd.f32 0.0, %v1037
    %v1039 = vpop.f32.mrb[0].mxu0
    %v1040 = vadd.f32 0.0, %v1039
    %v1041 = vpop.f32.mrb[0].mxu0
    %v1042 = vadd.f32 0.0, %v1041
    %1043 = vmatprep.mubr.bf16.mxu0 0
    %1044 = vmatmul.mubr.bf16.gmra.mrb[0].mxu0 %v211
    %v1045 = vpop.f32.mrb[0].mxu0
    %v1046 = vadd.f32 0.0, %v1045
    %v1047 = vpop.f32.mrb[0].mxu0
    %v1048 = vadd.f32 0.0, %v1047
    %v1049 = vpop.f32.mrb[0].mxu0
    %v1050 = vadd.f32 0.0, %v1049
    %v1051 = vpop.f32.mrb[0].mxu0
    %v1052 = vadd.f32 0.0, %v1051
    %1053 = vmatprep.mubr.bf16.mxu0 0
    %1054 = vmatmul.mubr.bf16.gmra.mrb[0].mxu0 %v212
    %v1055 = vpop.f32.mrb[0].mxu0
    %v1056 = vadd.f32 0.0, %v1055
    %v1057 = vpop.f32.mrb[0].mxu0
    %v1058 = vadd.f32 0.0, %v1057
    %v1059 = vpop.f32.mrb[0].mxu0
    %v1060 = vadd.f32 0.0, %v1059
    %v1061 = vpop.f32.mrb[0].mxu0
    %v1062 = vadd.f32 0.0, %v1061
    %1063 = vdwg.mxu0
    %1064 = vmatprep.subr.bf16.mxu0 0
    %1065 = vmatpush1.bf16.msra.mxu0 %v825
    %1066 = vmatprep.subr.bf16.mxu0 0
    %1067 = vmatpush1.bf16.msra.mxu0 %v828
    %1068 = vmatprep.subr.bf16.mxu0 0
    %1069 = vmatpush1.bf16.msra.mxu0 %v831
    %1070 = vmatprep.subr.bf16.mxu0 0
    %1071 = vmatpush1.bf16.msra.mxu0 %v834
    %1072 = vmatprep.subr.bf16.mxu0 0
    %1073 = vmatpush1.bf16.msra.mxu0 %v837
    %1074 = vmatprep.subr.bf16.mxu0 0
    %1075 = vmatpush1.bf16.msra.mxu0 %v840
    %1076 = vmatprep.subr.bf16.mxu0 0
    %1077 = vmatpush1.bf16.msra.mxu0 %v843
    %1078 = vmatprep.subr.bf16.mxu0 0
    %1079 = vmatpush1.bf16.msra.mxu0 %v846
    %1080 = vmatprep.subr.bf16.mxu0 0
    %1081 = vmatpush1.bf16.msra.mxu0 0
    %1082 = vmatprep.subr.bf16.mxu0 0
    %1083 = vmatpush1.bf16.msra.mxu0 0
    %1084 = vmatprep.subr.bf16.mxu0 0
    %1085 = vmatpush1.bf16.msra.mxu0 0
    %1086 = vmatprep.subr.bf16.mxu0 0
    %1087 = vmatpush1.bf16.msra.mxu0 0
    %1088 = vmatprep.subr.bf16.mxu0 0
    %1089 = vmatpush1.bf16.msra.mxu0 0
    %1090 = vmatprep.subr.bf16.mxu0 0
    %1091 = vmatpush1.bf16.msra.mxu0 0
    %1092 = vmatprep.subr.bf16.mxu0 0
    %1093 = vmatpush1.bf16.msra.mxu0 0
    %1094 = vmatprep.subr.bf16.mxu0 0
    %1095 = vmatpush1.bf16.msra.mxu0 0
    %1096 = vmatprep.mubr.bf16.mxu0 0
    %1097 = vmatmul.mubr.bf16.gmra.mrb[0].mxu0 %v197
    %v1098 = vpop.f32.mrb[0].mxu0
    %v1099 = vadd.f32 0.0, %v1098
    %v1100 = vpop.f32.mrb[0].mxu0
    %v1101 = vpop.f32.mrb[0].mxu0
    %v1102 = vadd.f32 0.0, %v1101
    %v1103 = vpop.f32.mrb[0].mxu0
    %1104 = vmatprep.mubr.bf16.mxu0 0
    %1105 = vmatmul.mubr.bf16.gmra.mrb[0].mxu0 %v198
    %v1106 = vpop.f32.mrb[0].mxu0
    %v1107 = vadd.f32 0.0, %v1106
    %v1108 = vpop.f32.mrb[0].mxu0
    %v1109 = vpop.f32.mrb[0].mxu0
    %v1110 = vadd.f32 0.0, %v1109
    %v1111 = vpop.f32.mrb[0].mxu0
    %1112 = vmatprep.mubr.bf16.mxu0 0
    %1113 = vmatmul.mubr.bf16.gmra.mrb[0].mxu0 %v199
    %v1114 = vpop.f32.mrb[0].mxu0
    %v1115 = vadd.f32 0.0, %v1114
    %v1116 = vpop.f32.mrb[0].mxu0
    %v1117 = vpop.f32.mrb[0].mxu0
    %v1118 = vadd.f32 0.0, %v1117
    %v1119 = vpop.f32.mrb[0].mxu0
    %1120 = vmatprep.mubr.bf16.mxu0 0
    %1121 = vmatmul.mubr.bf16.gmra.mrb[0].mxu0 %v200
    %v1122 = vpop.f32.mrb[0].mxu0
    %v1123 = vadd.f32 0.0, %v1122
    %v1124 = vpop.f32.mrb[0].mxu0
    %v1125 = vpop.f32.mrb[0].mxu0
    %v1126 = vadd.f32 0.0, %v1125
    %v1127 = vpop.f32.mrb[0].mxu0
    %1128 = vmatprep.mubr.bf16.mxu0 0
    %1129 = vmatmul.mubr.bf16.gmra.mrb[0].mxu0 %v201
    %v1130 = vpop.f32.mrb[0].mxu0
    %v1131 = vadd.f32 0.0, %v1130
    %v1132 = vpop.f32.mrb[0].mxu0
    %v1133 = vpop.f32.mrb[0].mxu0
    %v1134 = vadd.f32 0.0, %v1133
    %v1135 = vpop.f32.mrb[0].mxu0
    %1136 = vmatprep.mubr.bf16.mxu0 0
    %1137 = vmatmul.mubr.bf16.gmra.mrb[0].mxu0 %v202
    %v1138 = vpop.f32.mrb[0].mxu0
    %v1139 = vadd.f32 0.0, %v1138
    %v1140 = vpop.f32.mrb[0].mxu0
    %v1141 = vpop.f32.mrb[0].mxu0
    %v1142 = vadd.f32 0.0, %v1141
    %v1143 = vpop.f32.mrb[0].mxu0
    %1144 = vmatprep.mubr.bf16.mxu0 0
    %1145 = vmatmul.mubr.bf16.gmra.mrb[0].mxu0 %v203
    %v1146 = vpop.f32.mrb[0].mxu0
    %v1147 = vadd.f32 0.0, %v1146
    %v1148 = vpop.f32.mrb[0].mxu0
    %v1149 = vpop.f32.mrb[0].mxu0
    %v1150 = vadd.f32 0.0, %v1149
    %v1151 = vpop.f32.mrb[0].mxu0
    %1152 = vmatprep.mubr.bf16.mxu0 0
    %1153 = vmatmul.mubr.bf16.gmra.mrb[0].mxu0 %v204
    %v1154 = vpop.f32.mrb[0].mxu0
    %v1155 = vadd.f32 0.0, %v1154
    %v1156 = vpop.f32.mrb[0].mxu0
    %v1157 = vpop.f32.mrb[0].mxu0
    %v1158 = vadd.f32 0.0, %v1157
    %v1159 = vpop.f32.mrb[0].mxu0
    %1160 = vmatprep.mubr.bf16.mxu0 0
    %1161 = vmatmul.mubr.bf16.gmra.mrb[0].mxu0 %v205
    %v1162 = vpop.f32.mrb[0].mxu0
    %v1163 = vadd.f32 0.0, %v1162
    %v1164 = vpop.f32.mrb[0].mxu0
    %v1165 = vpop.f32.mrb[0].mxu0
    %v1166 = vadd.f32 0.0, %v1165
    %v1167 = vpop.f32.mrb[0].mxu0
    %1168 = vmatprep.mubr.bf16.mxu0 0
    %1169 = vmatmul.mubr.bf16.gmra.mrb[0].mxu0 %v206
    %v1170 = vpop.f32.mrb[0].mxu0
    %v1171 = vadd.f32 0.0, %v1170
    %v1172 = vpop.f32.mrb[0].mxu0
    %v1173 = vpop.f32.mrb[0].mxu0
    %v1174 = vadd.f32 0.0, %v1173
    %v1175 = vpop.f32.mrb[0].mxu0
    %1176 = vmatprep.mubr.bf16.mxu0 0
    %1177 = vmatmul.mubr.bf16.gmra.mrb[0].mxu0 %v207
    %v1178 = vpop.f32.mrb[0].mxu0
    %v1179 = vadd.f32 0.0, %v1178
    %v1180 = vpop.f32.mrb[0].mxu0
    %v1181 = vpop.f32.mrb[0].mxu0
    %v1182 = vadd.f32 0.0, %v1181
    %v1183 = vpop.f32.mrb[0].mxu0
    %1184 = vmatprep.mubr.bf16.mxu0 0
    %1185 = vmatmul.mubr.bf16.gmra.mrb[0].mxu0 %v208
    %v1186 = vpop.f32.mrb[0].mxu0
    %v1187 = vadd.f32 0.0, %v1186
    %v1188 = vpop.f32.mrb[0].mxu0
    %v1189 = vpop.f32.mrb[0].mxu0
    %v1190 = vadd.f32 0.0, %v1189
    %v1191 = vpop.f32.mrb[0].mxu0
    %1192 = vmatprep.mubr.bf16.mxu0 0
    %1193 = vmatmul.mubr.bf16.gmra.mrb[0].mxu0 %v209
    %v1194 = vpop.f32.mrb[0].mxu0
    %v1195 = vadd.f32 0.0, %v1194
    %v1196 = vpop.f32.mrb[0].mxu0
    %v1197 = vpop.f32.mrb[0].mxu0
    %v1198 = vadd.f32 0.0, %v1197
    %v1199 = vpop.f32.mrb[0].mxu0
    %1200 = vmatprep.mubr.bf16.mxu0 0
    %1201 = vmatmul.mubr.bf16.gmra.mrb[0].mxu0 %v210
    %v1202 = vpop.f32.mrb[0].mxu0
    %v1203 = vadd.f32 0.0, %v1202
    %v1204 = vpop.f32.mrb[0].mxu0
    %v1205 = vpop.f32.mrb[0].mxu0
    %v1206 = vadd.f32 0.0, %v1205
    %v1207 = vpop.f32.mrb[0].mxu0
    %1208 = vmatprep.mubr.bf16.mxu0 0
    %1209 = vmatmul.mubr.bf16.gmra.mrb[0].mxu0 %v211
    %v1210 = vpop.f32.mrb[0].mxu0
    %v1211 = vadd.f32 0.0, %v1210
    %v1212 = vpop.f32.mrb[0].mxu0
    %v1213 = vpop.f32.mrb[0].mxu0
    %v1214 = vadd.f32 0.0, %v1213
    %v1215 = vpop.f32.mrb[0].mxu0
    %1216 = vmatprep.mubr.bf16.mxu0 0
    %1217 = vmatmul.mubr.bf16.gmra.mrb[0].mxu0 %v212
    %v1218 = vpop.f32.mrb[0].mxu0
    %v1219 = vadd.f32 0.0, %v1218
    %v1220 = vpop.f32.mrb[0].mxu0
    %v1221 = vpop.f32.mrb[0].mxu0
    %v1222 = vadd.f32 0.0, %v1221
    %v1223 = vpop.f32.mrb[0].mxu0
    %1224 = vdwg.mxu0
    %v1225 = vxor.u32 %v392, 2147483648
    %v1226 = vxor.u32 %v394, 2147483648
    %v1227 = vxor.u32 %v585, 2147483648
    %v1228 = vxor.u32 %v396, 2147483648
    %v1229 = vxor.u32 %v398, 2147483648
    %v1230 = vxor.u32 %v588, 2147483648
    %v1231 = vxor.u32 %v402, 2147483648
    %v1232 = vxor.u32 %v404, 2147483648
    %v1233 = vxor.u32 %v593, 2147483648
    %v1234 = vxor.u32 %v406, 2147483648
    %v1235 = vxor.u32 %v408, 2147483648
    %v1236 = vxor.u32 %v596, 2147483648
    %v1237 = vxor.u32 %v412, 2147483648
    %v1238 = vxor.u32 %v414, 2147483648
    %v1239 = vxor.u32 %v601, 2147483648
    %v1240 = vxor.u32 %v416, 2147483648
    %v1241 = vxor.u32 %v418, 2147483648
    %v1242 = vxor.u32 %v604, 2147483648
    %v1243 = vxor.u32 %v422, 2147483648
    %v1244 = vxor.u32 %v424, 2147483648
    %v1245 = vxor.u32 %v609, 2147483648
    %v1246 = vxor.u32 %v426, 2147483648
    %v1247 = vxor.u32 %v428, 2147483648
    %v1248 = vxor.u32 %v612, 2147483648
    %v1249 = vxor.u32 %v432, 2147483648
    %v1250 = vxor.u32 %v434, 2147483648
    %v1251 = vxor.u32 %v617, 2147483648
    %v1252 = vxor.u32 %v436, 2147483648
    %v1253 = vxor.u32 %v438, 2147483648
    %v1254 = vxor.u32 %v620, 2147483648
    %v1255 = vxor.u32 %v442, 2147483648
    %v1256 = vxor.u32 %v444, 2147483648
    %v1257 = vxor.u32 %v625, 2147483648
    %v1258 = vxor.u32 %v446, 2147483648
    %v1259 = vxor.u32 %v448, 2147483648
    %v1260 = vxor.u32 %v628, 2147483648
    %v1261 = vxor.u32 %v452, 2147483648
    %v1262 = vxor.u32 %v454, 2147483648
    %v1263 = vxor.u32 %v633, 2147483648
    %v1264 = vxor.u32 %v456, 2147483648
    %v1265 = vxor.u32 %v458, 2147483648
    %v1266 = vxor.u32 %v636, 2147483648
    %v1267 = vxor.u32 %v462, 2147483648
    %v1268 = vxor.u32 %v464, 2147483648
    %v1269 = vxor.u32 %v641, 2147483648
    %v1270 = vxor.u32 %v466, 2147483648
    %v1271 = vxor.u32 %v468, 2147483648
    %v1272 = vxor.u32 %v644, 2147483648
    %v1273 = vxor.u32 %v472, 2147483648
    %v1274 = vxor.u32 %v474, 2147483648
    %v1275 = vxor.u32 %v649, 2147483648
    %v1276 = vxor.u32 %v476, 2147483648
    %v1277 = vxor.u32 %v478, 2147483648
    %v1278 = vxor.u32 %v652, 2147483648
    %v1279 = vxor.u32 %v482, 2147483648
    %v1280 = vxor.u32 %v484, 2147483648
    %v1281 = vxor.u32 %v657, 2147483648
    %v1282 = vxor.u32 %v486, 2147483648
    %v1283 = vxor.u32 %v488, 2147483648
    %v1284 = vxor.u32 %v660, 2147483648
    %v1285 = vxor.u32 %v492, 2147483648
    %v1286 = vxor.u32 %v494, 2147483648
    %v1287 = vxor.u32 %v665, 2147483648
    %v1288 = vxor.u32 %v496, 2147483648
    %v1289 = vxor.u32 %v498, 2147483648
    %v1290 = vxor.u32 %v668, 2147483648
    %v1291 = vxor.u32 %v502, 2147483648
    %v1292 = vxor.u32 %v504, 2147483648
    %v1293 = vxor.u32 %v673, 2147483648
    %v1294 = vxor.u32 %v506, 2147483648
    %v1295 = vxor.u32 %v508, 2147483648
    %v1296 = vxor.u32 %v676, 2147483648
    %v1297 = vxor.u32 %v512, 2147483648
    %v1298 = vxor.u32 %v514, 2147483648
    %v1299 = vxor.u32 %v681, 2147483648
    %v1300 = vxor.u32 %v516, 2147483648
    %v1301 = vxor.u32 %v518, 2147483648
    %v1302 = vxor.u32 %v684, 2147483648
    %v1303 = vxor.u32 %v522, 2147483648
    %v1304 = vxor.u32 %v524, 2147483648
    %v1305 = vxor.u32 %v689, 2147483648
    %v1306 = vxor.u32 %v526, 2147483648
    %v1307 = vxor.u32 %v528, 2147483648
    %v1308 = vxor.u32 %v692, 2147483648
    %v1309 = vxor.u32 %v532, 2147483648
    %v1310 = vxor.u32 %v534, 2147483648
    %v1311 = vxor.u32 %v697, 2147483648
    %v1312 = vxor.u32 %v536, 2147483648
    %v1313 = vxor.u32 %v538, 2147483648
    %v1314 = vxor.u32 %v700, 2147483648
    %v1315 = vxor.u32 %v542, 2147483648
    %v1316 = vxor.u32 %v544, 2147483648
    %v1317 = vxor.u32 %v705, 2147483648
    %v1318 = vxor.u32 %v546, 2147483648
    %v1319 = vxor.u32 %v548, 2147483648
    %v1320 = vxor.u32 %v708, 2147483648
    %v1321 = vmul.f32 %v1225, 1.442695
    %v1322 = vpow.pop %v1321
    %v1323 = vmul.f32 %v1226, 1.442695
    %v1324 = vpow.pop %v1323
    %v1325 = vmul.f32 %v1227, 1.442695
    %v1326 = vpow.pop %v1325
    %v1327 = vmul.f32 %v1228, 1.442695
    %v1328 = vpow.pop %v1327
    %v1329 = vmul.f32 %v1229, 1.442695
    %v1330 = vpow.pop %v1329
    %v1331 = vmul.f32 %v1230, 1.442695
    %v1332 = vpow.pop %v1331
    %v1333 = vmul.f32 %v1231, 1.442695
    %v1334 = vpow.pop %v1333
    %v1335 = vmul.f32 %v1232, 1.442695
    %v1336 = vpow.pop %v1335
    %v1337 = vmul.f32 %v1233, 1.442695
    %v1338 = vpow.pop %v1337
    %v1339 = vmul.f32 %v1234, 1.442695
    %v1340 = vpow.pop %v1339
    %v1341 = vmul.f32 %v1235, 1.442695
    %v1342 = vpow.pop %v1341
    %v1343 = vmul.f32 %v1236, 1.442695
    %v1344 = vpow.pop %v1343
    %v1345 = vmul.f32 %v1237, 1.442695
    %v1346 = vpow.pop %v1345
    %v1347 = vmul.f32 %v1238, 1.442695
    %v1348 = vpow.pop %v1347
    %v1349 = vmul.f32 %v1239, 1.442695
    %v1350 = vpow.pop %v1349
    %v1351 = vmul.f32 %v1240, 1.442695
    %v1352 = vpow.pop %v1351
    %v1353 = vmul.f32 %v1241, 1.442695
    %v1354 = vpow.pop %v1353
    %v1355 = vmul.f32 %v1242, 1.442695
    %v1356 = vpow.pop %v1355
    %v1357 = vmul.f32 %v1243, 1.442695
    %v1358 = vpow.pop %v1357
    %v1359 = vmul.f32 %v1244, 1.442695
    %v1360 = vpow.pop %v1359
    %v1361 = vmul.f32 %v1245, 1.442695
    %v1362 = vpow.pop %v1361
    %v1363 = vmul.f32 %v1246, 1.442695
    %v1364 = vpow.pop %v1363
    %v1365 = vmul.f32 %v1247, 1.442695
    %v1366 = vpow.pop %v1365
    %v1367 = vmul.f32 %v1248, 1.442695
    %v1368 = vpow.pop %v1367
    %v1369 = vmul.f32 %v1249, 1.442695
    %v1370 = vpow.pop %v1369
    %v1371 = vmul.f32 %v1250, 1.442695
    %v1372 = vpow.pop %v1371
    %v1373 = vmul.f32 %v1251, 1.442695
    %v1374 = vpow.pop %v1373
    %v1375 = vmul.f32 %v1252, 1.442695
    %v1376 = vpow.pop %v1375
    %v1377 = vmul.f32 %v1253, 1.442695
    %v1378 = vpow.pop %v1377
    %v1379 = vmul.f32 %v1254, 1.442695
    %v1380 = vpow.pop %v1379
    %v1381 = vmul.f32 %v1255, 1.442695
    %v1382 = vpow.pop %v1381
    %v1383 = vmul.f32 %v1256, 1.442695
    %v1384 = vpow.pop %v1383
    %v1385 = vmul.f32 %v1257, 1.442695
    %v1386 = vpow.pop %v1385
    %v1387 = vmul.f32 %v1258, 1.442695
    %v1388 = vpow.pop %v1387
    %v1389 = vmul.f32 %v1259, 1.442695
    %v1390 = vpow.pop %v1389
    %v1391 = vmul.f32 %v1260, 1.442695
    %v1392 = vpow.pop %v1391
    %v1393 = vmul.f32 %v1261, 1.442695
    %v1394 = vpow.pop %v1393
    %v1395 = vmul.f32 %v1262, 1.442695
    %v1396 = vpow.pop %v1395
    %v1397 = vmul.f32 %v1263, 1.442695
    %v1398 = vpow.pop %v1397
    %v1399 = vmul.f32 %v1264, 1.442695
    %v1400 = vpow.pop %v1399
    %v1401 = vmul.f32 %v1265, 1.442695
    %v1402 = vpow.pop %v1401
    %v1403 = vmul.f32 %v1266, 1.442695
    %v1404 = vpow.pop %v1403
    %v1405 = vmul.f32 %v1267, 1.442695
    %v1406 = vpow.pop %v1405
    %v1407 = vmul.f32 %v1268, 1.442695
    %v1408 = vpow.pop %v1407
    %v1409 = vmul.f32 %v1269, 1.442695
    %v1410 = vpow.pop %v1409
    %v1411 = vmul.f32 %v1270, 1.442695
    %v1412 = vpow.pop %v1411
    %v1413 = vmul.f32 %v1271, 1.442695
    %v1414 = vpow.pop %v1413
    %v1415 = vmul.f32 %v1272, 1.442695
    %v1416 = vpow.pop %v1415
    %v1417 = vmul.f32 %v1273, 1.442695
    %v1418 = vpow.pop %v1417
    %v1419 = vmul.f32 %v1274, 1.442695
    %v1420 = vpow.pop %v1419
    %v1421 = vmul.f32 %v1275, 1.442695
    %v1422 = vpow.pop %v1421
    %v1423 = vmul.f32 %v1276, 1.442695
    %v1424 = vpow.pop %v1423
    %v1425 = vmul.f32 %v1277, 1.442695
    %v1426 = vpow.pop %v1425
    %v1427 = vmul.f32 %v1278, 1.442695
    %v1428 = vpow.pop %v1427
    %v1429 = vmul.f32 %v1279, 1.442695
    %v1430 = vpow.pop %v1429
    %v1431 = vmul.f32 %v1280, 1.442695
    %v1432 = vpow.pop %v1431
    %v1433 = vmul.f32 %v1281, 1.442695
    %v1434 = vpow.pop %v1433
    %v1435 = vmul.f32 %v1282, 1.442695
    %v1436 = vpow.pop %v1435
    %v1437 = vmul.f32 %v1283, 1.442695
    %v1438 = vpow.pop %v1437
    %v1439 = vmul.f32 %v1284, 1.442695
    %v1440 = vpow.pop %v1439
    %v1441 = vmul.f32 %v1285, 1.442695
    %v1442 = vpow.pop %v1441
    %v1443 = vmul.f32 %v1286, 1.442695
    %v1444 = vpow.pop %v1443
    %v1445 = vmul.f32 %v1287, 1.442695
    %v1446 = vpow.pop %v1445
    %v1447 = vmul.f32 %v1288, 1.442695
    %v1448 = vpow.pop %v1447
    %v1449 = vmul.f32 %v1289, 1.442695
    %v1450 = vpow.pop %v1449
    %v1451 = vmul.f32 %v1290, 1.442695
    %v1452 = vpow.pop %v1451
    %v1453 = vmul.f32 %v1291, 1.442695
    %v1454 = vpow.pop %v1453
    %v1455 = vmul.f32 %v1292, 1.442695
    %v1456 = vpow.pop %v1455
    %v1457 = vmul.f32 %v1293, 1.442695
    %v1458 = vpow.pop %v1457
    %v1459 = vmul.f32 %v1294, 1.442695
    %v1460 = vpow.pop %v1459
    %v1461 = vmul.f32 %v1295, 1.442695
    %v1462 = vpow.pop %v1461
    %v1463 = vmul.f32 %v1296, 1.442695
    %v1464 = vpow.pop %v1463
    %v1465 = vmul.f32 %v1297, 1.442695
    %v1466 = vpow.pop %v1465
    %v1467 = vmul.f32 %v1298, 1.442695
    %v1468 = vpow.pop %v1467
    %v1469 = vmul.f32 %v1299, 1.442695
    %v1470 = vpow.pop %v1469
    %v1471 = vmul.f32 %v1300, 1.442695
    %v1472 = vpow.pop %v1471
    %v1473 = vmul.f32 %v1301, 1.442695
    %v1474 = vpow.pop %v1473
    %v1475 = vmul.f32 %v1302, 1.442695
    %v1476 = vpow.pop %v1475
    %v1477 = vmul.f32 %v1303, 1.442695
    %v1478 = vpow.pop %v1477
    %v1479 = vmul.f32 %v1304, 1.442695
    %v1480 = vpow.pop %v1479
    %v1481 = vmul.f32 %v1305, 1.442695
    %v1482 = vpow.pop %v1481
    %v1483 = vmul.f32 %v1306, 1.442695
    %v1484 = vpow.pop %v1483
    %v1485 = vmul.f32 %v1307, 1.442695
    %v1486 = vpow.pop %v1485
    %v1487 = vmul.f32 %v1308, 1.442695
    %v1488 = vpow.pop %v1487
    %v1489 = vmul.f32 %v1309, 1.442695
    %v1490 = vpow.pop %v1489
    %v1491 = vmul.f32 %v1310, 1.442695
    %v1492 = vpow.pop %v1491
    %v1493 = vmul.f32 %v1311, 1.442695
    %v1494 = vpow.pop %v1493
    %v1495 = vmul.f32 %v1312, 1.442695
    %v1496 = vpow.pop %v1495
    %v1497 = vmul.f32 %v1313, 1.442695
    %v1498 = vpow.pop %v1497
    %v1499 = vmul.f32 %v1314, 1.442695
    %v1500 = vpow.pop %v1499
    %v1501 = vmul.f32 %v1315, 1.442695
    %v1502 = vpow.pop %v1501
    %v1503 = vmul.f32 %v1316, 1.442695
    %v1504 = vpow.pop %v1503
    %v1505 = vmul.f32 %v1317, 1.442695
    %v1506 = vpow.pop %v1505
    %v1507 = vmul.f32 %v1318, 1.442695
    %v1508 = vpow.pop %v1507
    %v1509 = vmul.f32 %v1319, 1.442695
    %v1510 = vpow.pop %v1509
    %v1511 = vmul.f32 %v1320, 1.442695
    %v1512 = vpow.pop %v1511
    %v1513 = vadd.f32 %v1322, 1.0
    %v1514 = vadd.f32 %v1324, 1.0
    %v1515 = vadd.f32 %v1326, 1.0
    %v1516 = vadd.f32 %v1328, 1.0
    %v1517 = vadd.f32 %v1330, 1.0
    %v1518 = vadd.f32 %v1332, 1.0
    %v1519 = vadd.f32 %v1334, 1.0
    %v1520 = vadd.f32 %v1336, 1.0
    %v1521 = vadd.f32 %v1338, 1.0
    %v1522 = vadd.f32 %v1340, 1.0
    %v1523 = vadd.f32 %v1342, 1.0
    %v1524 = vadd.f32 %v1344, 1.0
    %v1525 = vadd.f32 %v1346, 1.0
    %v1526 = vadd.f32 %v1348, 1.0
    %v1527 = vadd.f32 %v1350, 1.0
    %v1528 = vadd.f32 %v1352, 1.0
    %v1529 = vadd.f32 %v1354, 1.0
    %v1530 = vadd.f32 %v1356, 1.0
    %v1531 = vadd.f32 %v1358, 1.0
    %v1532 = vadd.f32 %v1360, 1.0
    %v1533 = vadd.f32 %v1362, 1.0
    %v1534 = vadd.f32 %v1364, 1.0
    %v1535 = vadd.f32 %v1366, 1.0
    %v1536 = vadd.f32 %v1368, 1.0
    %v1537 = vadd.f32 %v1370, 1.0
    %v1538 = vadd.f32 %v1372, 1.0
    %v1539 = vadd.f32 %v1374, 1.0
    %v1540 = vadd.f32 %v1376, 1.0
    %v1541 = vadd.f32 %v1378, 1.0
    %v1542 = vadd.f32 %v1380, 1.0
    %v1543 = vadd.f32 %v1382, 1.0
    %v1544 = vadd.f32 %v1384, 1.0
    %v1545 = vadd.f32 %v1386, 1.0
    %v1546 = vadd.f32 %v1388, 1.0
    %v1547 = vadd.f32 %v1390, 1.0
    %v1548 = vadd.f32 %v1392, 1.0
    %v1549 = vadd.f32 %v1394, 1.0
    %v1550 = vadd.f32 %v1396, 1.0
    %v1551 = vadd.f32 %v1398, 1.0
    %v1552 = vadd.f32 %v1400, 1.0
    %v1553 = vadd.f32 %v1402, 1.0
    %v1554 = vadd.f32 %v1404, 1.0
    %v1555 = vadd.f32 %v1406, 1.0
    %v1556 = vadd.f32 %v1408, 1.0
    %v1557 = vadd.f32 %v1410, 1.0
    %v1558 = vadd.f32 %v1412, 1.0
    %v1559 = vadd.f32 %v1414, 1.0
    %v1560 = vadd.f32 %v1416, 1.0
    %v1561 = vadd.f32 %v1418, 1.0
    %v1562 = vadd.f32 %v1420, 1.0
    %v1563 = vadd.f32 %v1422, 1.0
    %v1564 = vadd.f32 %v1424, 1.0
    %v1565 = vadd.f32 %v1426, 1.0
    %v1566 = vadd.f32 %v1428, 1.0
    %v1567 = vadd.f32 %v1430, 1.0
    %v1568 = vadd.f32 %v1432, 1.0
    %v1569 = vadd.f32 %v1434, 1.0
    %v1570 = vadd.f32 %v1436, 1.0
    %v1571 = vadd.f32 %v1438, 1.0
    %v1572 = vadd.f32 %v1440, 1.0
    %v1573 = vadd.f32 %v1442, 1.0
    %v1574 = vadd.f32 %v1444, 1.0
    %v1575 = vadd.f32 %v1446, 1.0
    %v1576 = vadd.f32 %v1448, 1.0
    %v1577 = vadd.f32 %v1450, 1.0
    %v1578 = vadd.f32 %v1452, 1.0
    %v1579 = vadd.f32 %v1454, 1.0
    %v1580 = vadd.f32 %v1456, 1.0
    %v1581 = vadd.f32 %v1458, 1.0
    %v1582 = vadd.f32 %v1460, 1.0
    %v1583 = vadd.f32 %v1462, 1.0
    %v1584 = vadd.f32 %v1464, 1.0
    %v1585 = vadd.f32 %v1466, 1.0
    %v1586 = vadd.f32 %v1468, 1.0
    %v1587 = vadd.f32 %v1470, 1.0
    %v1588 = vadd.f32 %v1472, 1.0
    %v1589 = vadd.f32 %v1474, 1.0
    %v1590 = vadd.f32 %v1476, 1.0
    %v1591 = vadd.f32 %v1478, 1.0
    %v1592 = vadd.f32 %v1480, 1.0
    %v1593 = vadd.f32 %v1482, 1.0
    %v1594 = vadd.f32 %v1484, 1.0
    %v1595 = vadd.f32 %v1486, 1.0
    %v1596 = vadd.f32 %v1488, 1.0
    %v1597 = vadd.f32 %v1490, 1.0
    %v1598 = vadd.f32 %v1492, 1.0
    %v1599 = vadd.f32 %v1494, 1.0
    %v1600 = vadd.f32 %v1496, 1.0
    %v1601 = vadd.f32 %v1498, 1.0
    %v1602 = vadd.f32 %v1500, 1.0
    %v1603 = vadd.f32 %v1502, 1.0
    %v1604 = vadd.f32 %v1504, 1.0
    %v1605 = vadd.f32 %v1506, 1.0
    %v1606 = vadd.f32 %v1508, 1.0
    %v1607 = vadd.f32 %v1510, 1.0
    %v1608 = vadd.f32 %v1512, 1.0
    %v1609 = vrcp.pop %v1513
    %v1610 = vmul.f32 1.0, %v1609
    %v1611 = vrcp.pop %v1514
    %v1612 = vmul.f32 1.0, %v1611
    %v1613 = vrcp.pop %v1515
    %v1614 = vmul.f32 1.0, %v1613
    %v1615 = vrcp.pop %v1516
    %v1616 = vmul.f32 1.0, %v1615
    %v1617 = vrcp.pop %v1517
    %v1618 = vmul.f32 1.0, %v1617
    %v1619 = vrcp.pop %v1518
    %v1620 = vmul.f32 1.0, %v1619
    %v1621 = vrcp.pop %v1519
    %v1622 = vmul.f32 1.0, %v1621
    %v1623 = vrcp.pop %v1520
    %v1624 = vmul.f32 1.0, %v1623
    %v1625 = vrcp.pop %v1521
    %v1626 = vmul.f32 1.0, %v1625
    %v1627 = vrcp.pop %v1522
    %v1628 = vmul.f32 1.0, %v1627
    %v1629 = vrcp.pop %v1523
    %v1630 = vmul.f32 1.0, %v1629
    %v1631 = vrcp.pop %v1524
    %v1632 = vmul.f32 1.0, %v1631
    %v1633 = vrcp.pop %v1525
    %v1634 = vmul.f32 1.0, %v1633
    %v1635 = vrcp.pop %v1526
    %v1636 = vmul.f32 1.0, %v1635
    %v1637 = vrcp.pop %v1527
    %v1638 = vmul.f32 1.0, %v1637
    %v1639 = vrcp.pop %v1528
    %v1640 = vmul.f32 1.0, %v1639
    %v1641 = vrcp.pop %v1529
    %v1642 = vmul.f32 1.0, %v1641
    %v1643 = vrcp.pop %v1530
    %v1644 = vmul.f32 1.0, %v1643
    %v1645 = vrcp.pop %v1531
    %v1646 = vmul.f32 1.0, %v1645
    %v1647 = vrcp.pop %v1532
    %v1648 = vmul.f32 1.0, %v1647
    %v1649 = vrcp.pop %v1533
    %v1650 = vmul.f32 1.0, %v1649
    %v1651 = vrcp.pop %v1534
    %v1652 = vmul.f32 1.0, %v1651
    %v1653 = vrcp.pop %v1535
    %v1654 = vmul.f32 1.0, %v1653
    %v1655 = vrcp.pop %v1536
    %v1656 = vmul.f32 1.0, %v1655
    %v1657 = vrcp.pop %v1537
    %v1658 = vmul.f32 1.0, %v1657
    %v1659 = vrcp.pop %v1538
    %v1660 = vmul.f32 1.0, %v1659
    %v1661 = vrcp.pop %v1539
    %v1662 = vmul.f32 1.0, %v1661
    %v1663 = vrcp.pop %v1540
    %v1664 = vmul.f32 1.0, %v1663
    %v1665 = vrcp.pop %v1541
    %v1666 = vmul.f32 1.0, %v1665
    %v1667 = vrcp.pop %v1542
    %v1668 = vmul.f32 1.0, %v1667
    %v1669 = vrcp.pop %v1543
    %v1670 = vmul.f32 1.0, %v1669
    %v1671 = vrcp.pop %v1544
    %v1672 = vmul.f32 1.0, %v1671
    %v1673 = vrcp.pop %v1545
    %v1674 = vmul.f32 1.0, %v1673
    %v1675 = vrcp.pop %v1546
    %v1676 = vmul.f32 1.0, %v1675
    %v1677 = vrcp.pop %v1547
    %v1678 = vmul.f32 1.0, %v1677
    %v1679 = vrcp.pop %v1548
    %v1680 = vmul.f32 1.0, %v1679
    %v1681 = vrcp.pop %v1549
    %v1682 = vmul.f32 1.0, %v1681
    %v1683 = vrcp.pop %v1550
    %v1684 = vmul.f32 1.0, %v1683
    %v1685 = vrcp.pop %v1551
    %v1686 = vmul.f32 1.0, %v1685
    %v1687 = vrcp.pop %v1552
    %v1688 = vmul.f32 1.0, %v1687
    %v1689 = vrcp.pop %v1553
    %v1690 = vmul.f32 1.0, %v1689
    %v1691 = vrcp.pop %v1554
    %v1692 = vmul.f32 1.0, %v1691
    %v1693 = vrcp.pop %v1555
    %v1694 = vmul.f32 1.0, %v1693
    %v1695 = vrcp.pop %v1556
    %v1696 = vmul.f32 1.0, %v1695
    %v1697 = vrcp.pop %v1557
    %v1698 = vmul.f32 1.0, %v1697
    %v1699 = vrcp.pop %v1558
    %v1700 = vmul.f32 1.0, %v1699
    %v1701 = vrcp.pop %v1559
    %v1702 = vmul.f32 1.0, %v1701
    %v1703 = vrcp.pop %v1560
    %v1704 = vmul.f32 1.0, %v1703
    %v1705 = vrcp.pop %v1561
    %v1706 = vmul.f32 1.0, %v1705
    %v1707 = vrcp.pop %v1562
    %v1708 = vmul.f32 1.0, %v1707
    %v1709 = vrcp.pop %v1563
    %v1710 = vmul.f32 1.0, %v1709
    %v1711 = vrcp.pop %v1564
    %v1712 = vmul.f32 1.0, %v1711
    %v1713 = vrcp.pop %v1565
    %v1714 = vmul.f32 1.0, %v1713
    %v1715 = vrcp.pop %v1566
    %v1716 = vmul.f32 1.0, %v1715
    %v1717 = vrcp.pop %v1567
    %v1718 = vmul.f32 1.0, %v1717
    %v1719 = vrcp.pop %v1568
    %v1720 = vmul.f32 1.0, %v1719
    %v1721 = vrcp.pop %v1569
    %v1722 = vmul.f32 1.0, %v1721
    %v1723 = vrcp.pop %v1570
    %v1724 = vmul.f32 1.0, %v1723
    %v1725 = vrcp.pop %v1571
    %v1726 = vmul.f32 1.0, %v1725
    %v1727 = vrcp.pop %v1572
    %v1728 = vmul.f32 1.0, %v1727
    %v1729 = vrcp.pop %v1573
    %v1730 = vmul.f32 1.0, %v1729
    %v1731 = vrcp.pop %v1574
    %v1732 = vmul.f32 1.0, %v1731
    %v1733 = vrcp.pop %v1575
    %v1734 = vmul.f32 1.0, %v1733
    %v1735 = vrcp.pop %v1576
    %v1736 = vmul.f32 1.0, %v1735
    %v1737 = vrcp.pop %v1577
    %v1738 = vmul.f32 1.0, %v1737
    %v1739 = vrcp.pop %v1578
    %v1740 = vmul.f32 1.0, %v1739
    %v1741 = vrcp.pop %v1579
    %v1742 = vmul.f32 1.0, %v1741
    %v1743 = vrcp.pop %v1580
    %v1744 = vmul.f32 1.0, %v1743
    %v1745 = vrcp.pop %v1581
    %v1746 = vmul.f32 1.0, %v1745
    %v1747 = vrcp.pop %v1582
    %v1748 = vmul.f32 1.0, %v1747
    %v1749 = vrcp.pop %v1583
    %v1750 = vmul.f32 1.0, %v1749
    %v1751 = vrcp.pop %v1584
    %v1752 = vmul.f32 1.0, %v1751
    %v1753 = vrcp.pop %v1585
    %v1754 = vmul.f32 1.0, %v1753
    %v1755 = vrcp.pop %v1586
    %v1756 = vmul.f32 1.0, %v1755
    %v1757 = vrcp.pop %v1587
    %v1758 = vmul.f32 1.0, %v1757
    %v1759 = vrcp.pop %v1588
    %v1760 = vmul.f32 1.0, %v1759
    %v1761 = vrcp.pop %v1589
    %v1762 = vmul.f32 1.0, %v1761
    %v1763 = vrcp.pop %v1590
    %v1764 = vmul.f32 1.0, %v1763
    %v1765 = vrcp.pop %v1591
    %v1766 = vmul.f32 1.0, %v1765
    %v1767 = vrcp.pop %v1592
    %v1768 = vmul.f32 1.0, %v1767
    %v1769 = vrcp.pop %v1593
    %v1770 = vmul.f32 1.0, %v1769
    %v1771 = vrcp.pop %v1594
    %v1772 = vmul.f32 1.0, %v1771
    %v1773 = vrcp.pop %v1595
    %v1774 = vmul.f32 1.0, %v1773
    %v1775 = vrcp.pop %v1596
    %v1776 = vmul.f32 1.0, %v1775
    %v1777 = vrcp.pop %v1597
    %v1778 = vmul.f32 1.0, %v1777
    %v1779 = vrcp.pop %v1598
    %v1780 = vmul.f32 1.0, %v1779
    %v1781 = vrcp.pop %v1599
    %v1782 = vmul.f32 1.0, %v1781
    %v1783 = vrcp.pop %v1600
    %v1784 = vmul.f32 1.0, %v1783
    %v1785 = vrcp.pop %v1601
    %v1786 = vmul.f32 1.0, %v1785
    %v1787 = vrcp.pop %v1602
    %v1788 = vmul.f32 1.0, %v1787
    %v1789 = vrcp.pop %v1603
    %v1790 = vmul.f32 1.0, %v1789
    %v1791 = vrcp.pop %v1604
    %v1792 = vmul.f32 1.0, %v1791
    %v1793 = vrcp.pop %v1605
    %v1794 = vmul.f32 1.0, %v1793
    %v1795 = vrcp.pop %v1606
    %v1796 = vmul.f32 1.0, %v1795
    %v1797 = vrcp.pop %v1607
    %v1798 = vmul.f32 1.0, %v1797
    %v1799 = vrcp.pop %v1608
    %v1800 = vmul.f32 1.0, %v1799
    %v1801 = vmul.f32 %v392, %v1610
    %v1802 = vmul.f32 %v394, %v1612
    %v1803 = vmul.f32 %v585, %v1614
    %v1804 = vmul.f32 %v396, %v1616
    %v1805 = vmul.f32 %v398, %v1618
    %v1806 = vmul.f32 %v588, %v1620
    %v1807 = vmul.f32 %v402, %v1622
    %v1808 = vmul.f32 %v404, %v1624
    %v1809 = vmul.f32 %v593, %v1626
    %v1810 = vmul.f32 %v406, %v1628
    %v1811 = vmul.f32 %v408, %v1630
    %v1812 = vmul.f32 %v596, %v1632
    %v1813 = vmul.f32 %v412, %v1634
    %v1814 = vmul.f32 %v414, %v1636
    %v1815 = vmul.f32 %v601, %v1638
    %v1816 = vmul.f32 %v416, %v1640
    %v1817 = vmul.f32 %v418, %v1642
    %v1818 = vmul.f32 %v604, %v1644
    %v1819 = vmul.f32 %v422, %v1646
    %v1820 = vmul.f32 %v424, %v1648
    %v1821 = vmul.f32 %v609, %v1650
    %v1822 = vmul.f32 %v426, %v1652
    %v1823 = vmul.f32 %v428, %v1654
    %v1824 = vmul.f32 %v612, %v1656
    %v1825 = vmul.f32 %v432, %v1658
    %v1826 = vmul.f32 %v434, %v1660
    %v1827 = vmul.f32 %v617, %v1662
    %v1828 = vmul.f32 %v436, %v1664
    %v1829 = vmul.f32 %v438, %v1666
    %v1830 = vmul.f32 %v620, %v1668
    %v1831 = vmul.f32 %v442, %v1670
    %v1832 = vmul.f32 %v444, %v1672
    %v1833 = vmul.f32 %v625, %v1674
    %v1834 = vmul.f32 %v446, %v1676
    %v1835 = vmul.f32 %v448, %v1678
    %v1836 = vmul.f32 %v628, %v1680
    %v1837 = vmul.f32 %v452, %v1682
    %v1838 = vmul.f32 %v454, %v1684
    %v1839 = vmul.f32 %v633, %v1686
    %v1840 = vmul.f32 %v456, %v1688
    %v1841 = vmul.f32 %v458, %v1690
    %v1842 = vmul.f32 %v636, %v1692
    %v1843 = vmul.f32 %v462, %v1694
    %v1844 = vmul.f32 %v464, %v1696
    %v1845 = vmul.f32 %v641, %v1698
    %v1846 = vmul.f32 %v466, %v1700
    %v1847 = vmul.f32 %v468, %v1702
    %v1848 = vmul.f32 %v644, %v1704
    %v1849 = vmul.f32 %v472, %v1706
    %v1850 = vmul.f32 %v474, %v1708
    %v1851 = vmul.f32 %v649, %v1710
    %v1852 = vmul.f32 %v476, %v1712
    %v1853 = vmul.f32 %v478, %v1714
    %v1854 = vmul.f32 %v652, %v1716
    %v1855 = vmul.f32 %v482, %v1718
    %v1856 = vmul.f32 %v484, %v1720
    %v1857 = vmul.f32 %v657, %v1722
    %v1858 = vmul.f32 %v486, %v1724
    %v1859 = vmul.f32 %v488, %v1726
    %v1860 = vmul.f32 %v660, %v1728
    %v1861 = vmul.f32 %v492, %v1730
    %v1862 = vmul.f32 %v494, %v1732
    %v1863 = vmul.f32 %v665, %v1734
    %v1864 = vmul.f32 %v496, %v1736
    %v1865 = vmul.f32 %v498, %v1738
    %v1866 = vmul.f32 %v668, %v1740
    %v1867 = vmul.f32 %v502, %v1742
    %v1868 = vmul.f32 %v504, %v1744
    %v1869 = vmul.f32 %v673, %v1746
    %v1870 = vmul.f32 %v506, %v1748
    %v1871 = vmul.f32 %v508, %v1750
    %v1872 = vmul.f32 %v676, %v1752
    %v1873 = vmul.f32 %v512, %v1754
    %v1874 = vmul.f32 %v514, %v1756
    %v1875 = vmul.f32 %v681, %v1758
    %v1876 = vmul.f32 %v516, %v1760
    %v1877 = vmul.f32 %v518, %v1762
    %v1878 = vmul.f32 %v684, %v1764
    %v1879 = vmul.f32 %v522, %v1766
    %v1880 = vmul.f32 %v524, %v1768
    %v1881 = vmul.f32 %v689, %v1770
    %v1882 = vmul.f32 %v526, %v1772
    %v1883 = vmul.f32 %v528, %v1774
    %v1884 = vmul.f32 %v692, %v1776
    %v1885 = vmul.f32 %v532, %v1778
    %v1886 = vmul.f32 %v534, %v1780
    %v1887 = vmul.f32 %v697, %v1782
    %v1888 = vmul.f32 %v536, %v1784
    %v1889 = vmul.f32 %v538, %v1786
    %v1890 = vmul.f32 %v700, %v1788
    %v1891 = vmul.f32 %v542, %v1790
    %v1892 = vmul.f32 %v544, %v1792
    %v1893 = vmul.f32 %v705, %v1794
    %v1894 = vmul.f32 %v546, %v1796
    %v1895 = vmul.f32 %v548, %v1798
    %v1896 = vmul.f32 %v708, %v1800
    %v1897 = vmul.f32 %v1801, %v906
    %v1898 = vmul.f32 %v1802, %v908
    %v1899 = vmul.f32 %v1803, %v1099
    %v1900 = vmul.f32 %v1804, %v910
    %v1901 = vmul.f32 %v1805, %v912
    %v1902 = vmul.f32 %v1806, %v1102
    %v1903 = vmul.f32 %v1807, %v916
    %v1904 = vmul.f32 %v1808, %v918
    %v1905 = vmul.f32 %v1809, %v1107
    %v1906 = vmul.f32 %v1810, %v920
    %v1907 = vmul.f32 %v1811, %v922
    %v1908 = vmul.f32 %v1812, %v1110
    %v1909 = vmul.f32 %v1813, %v926
    %v1910 = vmul.f32 %v1814, %v928
    %v1911 = vmul.f32 %v1815, %v1115
    %v1912 = vmul.f32 %v1816, %v930
    %v1913 = vmul.f32 %v1817, %v932
    %v1914 = vmul.f32 %v1818, %v1118
    %v1915 = vmul.f32 %v1819, %v936
    %v1916 = vmul.f32 %v1820, %v938
    %v1917 = vmul.f32 %v1821, %v1123
    %v1918 = vmul.f32 %v1822, %v940
    %v1919 = vmul.f32 %v1823, %v942
    %v1920 = vmul.f32 %v1824, %v1126
    %v1921 = vmul.f32 %v1825, %v946
    %v1922 = vmul.f32 %v1826, %v948
    %v1923 = vmul.f32 %v1827, %v1131
    %v1924 = vmul.f32 %v1828, %v950
    %v1925 = vmul.f32 %v1829, %v952
    %v1926 = vmul.f32 %v1830, %v1134
    %v1927 = vmul.f32 %v1831, %v956
    %v1928 = vmul.f32 %v1832, %v958
    %v1929 = vmul.f32 %v1833, %v1139
    %v1930 = vmul.f32 %v1834, %v960
    %v1931 = vmul.f32 %v1835, %v962
    %v1932 = vmul.f32 %v1836, %v1142
    %v1933 = vmul.f32 %v1837, %v966
    %v1934 = vmul.f32 %v1838, %v968
    %v1935 = vmul.f32 %v1839, %v1147
    %v1936 = vmul.f32 %v1840, %v970
    %v1937 = vmul.f32 %v1841, %v972
    %v1938 = vmul.f32 %v1842, %v1150
    %v1939 = vmul.f32 %v1843, %v976
    %v1940 = vmul.f32 %v1844, %v978
    %v1941 = vmul.f32 %v1845, %v1155
    %v1942 = vmul.f32 %v1846, %v980
    %v1943 = vmul.f32 %v1847, %v982
    %v1944 = vmul.f32 %v1848, %v1158
    %v1945 = vmul.f32 %v1849, %v986
    %v1946 = vmul.f32 %v1850, %v988
    %v1947 = vmul.f32 %v1851, %v1163
    %v1948 = vmul.f32 %v1852, %v990
    %v1949 = vmul.f32 %v1853, %v992
    %v1950 = vmul.f32 %v1854, %v1166
    %v1951 = vmul.f32 %v1855, %v996
    %v1952 = vmul.f32 %v1856, %v998
    %v1953 = vmul.f32 %v1857, %v1171
    %v1954 = vmul.f32 %v1858, %v1000
    %v1955 = vmul.f32 %v1859, %v1002
    %v1956 = vmul.f32 %v1860, %v1174
    %v1957 = vmul.f32 %v1861, %v1006
    %v1958 = vmul.f32 %v1862, %v1008
    %v1959 = vmul.f32 %v1863, %v1179
    %v1960 = vmul.f32 %v1864, %v1010
    %v1961 = vmul.f32 %v1865, %v1012
    %v1962 = vmul.f32 %v1866, %v1182
    %v1963 = vmul.f32 %v1867, %v1016
    %v1964 = vmul.f32 %v1868, %v1018
    %v1965 = vmul.f32 %v1869, %v1187
    %v1966 = vmul.f32 %v1870, %v1020
    %v1967 = vmul.f32 %v1871, %v1022
    %v1968 = vmul.f32 %v1872, %v1190
    %v1969 = vmul.f32 %v1873, %v1026
    %v1970 = vmul.f32 %v1874, %v1028
    %v1971 = vmul.f32 %v1875, %v1195
    %v1972 = vmul.f32 %v1876, %v1030
    %v1973 = vmul.f32 %v1877, %v1032
    %v1974 = vmul.f32 %v1878, %v1198
    %v1975 = vmul.f32 %v1879, %v1036
    %v1976 = vmul.f32 %v1880, %v1038
    %v1977 = vmul.f32 %v1881, %v1203
    %v1978 = vmul.f32 %v1882, %v1040
    %v1979 = vmul.f32 %v1883, %v1042
    %v1980 = vmul.f32 %v1884, %v1206
    %v1981 = vmul.f32 %v1885, %v1046
    %v1982 = vmul.f32 %v1886, %v1048
    %v1983 = vmul.f32 %v1887, %v1211
    %v1984 = vmul.f32 %v1888, %v1050
    %v1985 = vmul.f32 %v1889, %v1052
    %v1986 = vmul.f32 %v1890, %v1214
    %v1987 = vmul.f32 %v1891, %v1056
    %v1988 = vmul.f32 %v1892, %v1058
    %v1989 = vmul.f32 %v1893, %v1219
    %v1990 = vmul.f32 %v1894, %v1060
    %v1991 = vmul.f32 %v1895, %v1062
    %v1992 = vmul.f32 %v1896, %v1222
    %v1993 = vld [vmem:[#allocation2] sm:$0xff]
    %v1994 = vld [vmem:[#allocation2 + $0x8] sm:$0xff]
    %v1995 = vld [vmem:[#allocation2 + $0x10] sm:$0xff]
    %v1996 = vld [vmem:[#allocation2 + $0x18] sm:$0xff]
    %v1997 = vld [vmem:[#allocation2 + $0x20] sm:$0xff]
    %v1998 = vld [vmem:[#allocation2 + $0x28] sm:$0xff]
    %v1999 = vld [vmem:[#allocation2 + $0x30] sm:$0xff]
    %v2000 = vld [vmem:[#allocation2 + $0x38] sm:$0xff]
    %v2001 = vld [vmem:[#allocation2 + $0x40] sm:$0xff]
    %v2002 = vld [vmem:[#allocation2 + $0x48] sm:$0xff]
    %v2003 = vld [vmem:[#allocation2 + $0x50] sm:$0xff]
    %v2004 = vld [vmem:[#allocation2 + $0x58] sm:$0xff]
    %v2005 = vld [vmem:[#allocation2 + $0x60] sm:$0xff]
    %v2006 = vld [vmem:[#allocation2 + $0x68] sm:$0xff]
    %v2007 = vld [vmem:[#allocation2 + $0x70] sm:$0xff]
    %v2008 = vld [vmem:[#allocation2 + $0x78] sm:$0xff]
    %v2009 = vld [vmem:[#allocation2 + $0x80] sm:$0xff]
    %v2010 = vld [vmem:[#allocation2 + $0x88] sm:$0xff]
    %v2011 = vld [vmem:[#allocation2 + $0x90] sm:$0xff]
    %v2012 = vld [vmem:[#allocation2 + $0x98] sm:$0xff]
    %v2013 = vld [vmem:[#allocation2 + $0xa0] sm:$0xff]
    %v2014 = vld [vmem:[#allocation2 + $0xa8] sm:$0xff]
    %v2015 = vld [vmem:[#allocation2 + $0xb0] sm:$0xff]
    %v2016 = vld [vmem:[#allocation2 + $0xb8] sm:$0xff]
    %v2017 = vld [vmem:[#allocation2 + $0xc0] sm:$0xff]
    %v2018 = vld [vmem:[#allocation2 + $0xc8] sm:$0xff]
    %v2019 = vld [vmem:[#allocation2 + $0xd0] sm:$0xff]
    %v2020 = vld [vmem:[#allocation2 + $0xd8] sm:$0xff]
    %v2021 = vld [vmem:[#allocation2 + $0xe0] sm:$0xff]
    %v2022 = vld [vmem:[#allocation2 + $0xe8] sm:$0xff]
    %v2023 = vld [vmem:[#allocation2 + $0xf0] sm:$0xff]
    %v2024 = vld [vmem:[#allocation2 + $0xf8] sm:$0xff]
    %v2025 = vpack.c.bf16 %v1900, %v1897
    %v2026 = vpack.c.bf16 %v1901, %v1898
    %v2027 = vpack.c.bf16 %v1902, %v1899
    %v2028 = vpack.c.bf16 %v1906, %v1903
    %v2029 = vpack.c.bf16 %v1907, %v1904
    %v2030 = vpack.c.bf16 %v1908, %v1905
    %v2031 = vpack.c.bf16 %v1912, %v1909
    %v2032 = vpack.c.bf16 %v1913, %v1910
    %v2033 = vpack.c.bf16 %v1914, %v1911
    %v2034 = vpack.c.bf16 %v1918, %v1915
    %v2035 = vpack.c.bf16 %v1919, %v1916
    %v2036 = vpack.c.bf16 %v1920, %v1917
    %v2037 = vpack.c.bf16 %v1924, %v1921
    %v2038 = vpack.c.bf16 %v1925, %v1922
    %v2039 = vpack.c.bf16 %v1926, %v1923
    %v2040 = vpack.c.bf16 %v1930, %v1927
    %v2041 = vpack.c.bf16 %v1931, %v1928
    %v2042 = vpack.c.bf16 %v1932, %v1929
    %v2043 = vpack.c.bf16 %v1936, %v1933
    %v2044 = vpack.c.bf16 %v1937, %v1934
    %v2045 = vpack.c.bf16 %v1938, %v1935
    %v2046 = vpack.c.bf16 %v1942, %v1939
    %v2047 = vpack.c.bf16 %v1943, %v1940
    %v2048 = vpack.c.bf16 %v1944, %v1941
    %v2049 = vpack.c.bf16 %v1948, %v1945
    %v2050 = vpack.c.bf16 %v1949, %v1946
    %v2051 = vpack.c.bf16 %v1950, %v1947
    %v2052 = vpack.c.bf16 %v1954, %v1951
    %v2053 = vpack.c.bf16 %v1955, %v1952
    %v2054 = vpack.c.bf16 %v1956, %v1953
    %v2055 = vpack.c.bf16 %v1960, %v1957
    %v2056 = vpack.c.bf16 %v1961, %v1958
    %v2057 = vpack.c.bf16 %v1962, %v1959
    %v2058 = vpack.c.bf16 %v1966, %v1963
    %v2059 = vpack.c.bf16 %v1967, %v1964
    %v2060 = vpack.c.bf16 %v1968, %v1965
    %v2061 = vpack.c.bf16 %v1972, %v1969
    %v2062 = vpack.c.bf16 %v1973, %v1970
    %v2063 = vpack.c.bf16 %v1974, %v1971
    %v2064 = vpack.c.bf16 %v1978, %v1975
    %v2065 = vpack.c.bf16 %v1979, %v1976
    %v2066 = vpack.c.bf16 %v1980, %v1977
    %v2067 = vpack.c.bf16 %v1984, %v1981
    %v2068 = vpack.c.bf16 %v1985, %v1982
    %v2069 = vpack.c.bf16 %v1986, %v1983
    %v2070 = vpack.c.bf16 %v1990, %v1987
    %v2071 = vpack.c.bf16 %v1991, %v1988
    %v2072 = vpack.c.bf16 %v1992, %v1989
    %v2073 = vld [vmem:[#allocation3] sm:$0xf]
    %v2074 = vld [vmem:[#allocation3 + $0x4] sm:$0xf]
    %v2075 = vld [vmem:[#allocation3 + $0x8] sm:$0xf]
    %v2076 = vld [vmem:[#allocation3 + $0xc] sm:$0xf]
    %v2077 = vld [vmem:[#allocation3 + $0x10] sm:$0xf]
    %v2078 = vld [vmem:[#allocation3 + $0x14] sm:$0xf]
    %v2079 = vld [vmem:[#allocation3 + $0x18] sm:$0xf]
    %v2080 = vld [vmem:[#allocation3 + $0x1c] sm:$0xf]
    %v2081 = vld [vmem:[#allocation3 + $0x20] sm:$0xf]
    %v2082 = vld [vmem:[#allocation3 + $0x24] sm:$0xf]
    %v2083 = vld [vmem:[#allocation3 + $0x28] sm:$0xf]
    %v2084 = vld [vmem:[#allocation3 + $0x2c] sm:$0xf]
    %v2085 = vld [vmem:[#allocation3 + $0x30] sm:$0xf]
    %v2086 = vld [vmem:[#allocation3 + $0x34] sm:$0xf]
    %v2087 = vld [vmem:[#allocation3 + $0x38] sm:$0xf]
    %v2088 = vld [vmem:[#allocation3 + $0x3c] sm:$0xf]
    %v2089 = vld [vmem:[#allocation3 + $0x40] sm:$0xf]
    %v2090 = vld [vmem:[#allocation3 + $0x44] sm:$0xf]
    %v2091 = vld [vmem:[#allocation3 + $0x48] sm:$0xf]
    %v2092 = vld [vmem:[#allocation3 + $0x4c] sm:$0xf]
    %v2093 = vld [vmem:[#allocation3 + $0x50] sm:$0xf]
    %v2094 = vld [vmem:[#allocation3 + $0x54] sm:$0xf]
    %v2095 = vld [vmem:[#allocation3 + $0x58] sm:$0xf]
    %v2096 = vld [vmem:[#allocation3 + $0x5c] sm:$0xf]
    %v2097 = vld [vmem:[#allocation3 + $0x60] sm:$0xf]
    %v2098 = vld [vmem:[#allocation3 + $0x64] sm:$0xf]
    %v2099 = vld [vmem:[#allocation3 + $0x68] sm:$0xf]
    %v2100 = vld [vmem:[#allocation3 + $0x6c] sm:$0xf]
    %v2101 = vld [vmem:[#allocation3 + $0x70] sm:$0xf]
    %v2102 = vld [vmem:[#allocation3 + $0x74] sm:$0xf]
    %v2103 = vld [vmem:[#allocation3 + $0x78] sm:$0xf]
    %v2104 = vld [vmem:[#allocation3 + $0x7c] sm:$0xf]
    %v2105 = vld [vmem:[#allocation3 + $0x80] sm:$0xf]
    %v2106 = vld [vmem:[#allocation3 + $0x84] sm:$0xf]
    %v2107 = vld [vmem:[#allocation3 + $0x88] sm:$0xf]
    %v2108 = vld [vmem:[#allocation3 + $0x8c] sm:$0xf]
    %v2109 = vld [vmem:[#allocation3 + $0x90] sm:$0xf]
    %v2110 = vld [vmem:[#allocation3 + $0x94] sm:$0xf]
    %v2111 = vld [vmem:[#allocation3 + $0x98] sm:$0xf]
    %v2112 = vld [vmem:[#allocation3 + $0x9c] sm:$0xf]
    %v2113 = vld [vmem:[#allocation3 + $0xa0] sm:$0xf]
    %v2114 = vld [vmem:[#allocation3 + $0xa4] sm:$0xf]
    %v2115 = vld [vmem:[#allocation3 + $0xa8] sm:$0xf]
    %v2116 = vld [vmem:[#allocation3 + $0xac] sm:$0xf]
    %v2117 = vld [vmem:[#allocation3 + $0xb0] sm:$0xf]
    %v2118 = vld [vmem:[#allocation3 + $0xb4] sm:$0xf]
    %v2119 = vld [vmem:[#allocation3 + $0xb8] sm:$0xf]
    %v2120 = vld [vmem:[#allocation3 + $0xbc] sm:$0xf]
    %v2169 = vunpack.c.l.b16 %v2073
    %v2170 = vunpack.c.l.b16 %v2074
    %v2171 = vunpack.c.l.b16 %v2075
    %v2172 = vunpack.c.l.b16 %v2076
    %v2173 = vunpack.c.l.b16 %v2077
    %v2174 = vunpack.c.l.b16 %v2078
    %v2175 = vunpack.c.l.b16 %v2079
    %v2176 = vunpack.c.l.b16 %v2080
    %v2177 = vunpack.c.l.b16 %v2081
    %v2178 = vunpack.c.l.b16 %v2082
    %v2179 = vunpack.c.l.b16 %v2083
    %v2180 = vunpack.c.l.b16 %v2084
    %v2181 = vunpack.c.l.b16 %v2085
    %v2182 = vunpack.c.l.b16 %v2086
    %v2183 = vunpack.c.l.b16 %v2087
    %v2184 = vunpack.c.l.b16 %v2088
    %v2185 = vunpack.c.l.b16 %v2089
    %v2186 = vunpack.c.l.b16 %v2090
    %v2187 = vunpack.c.l.b16 %v2091
    %v2188 = vunpack.c.l.b16 %v2092
    %v2189 = vunpack.c.l.b16 %v2093
    %v2190 = vunpack.c.l.b16 %v2094
    %v2191 = vunpack.c.l.b16 %v2095
    %v2192 = vunpack.c.l.b16 %v2096
    %v2193 = vunpack.c.l.b16 %v2097
    %v2194 = vunpack.c.l.b16 %v2098
    %v2195 = vunpack.c.l.b16 %v2099
    %v2196 = vunpack.c.l.b16 %v2100
    %v2197 = vunpack.c.l.b16 %v2101
    %v2198 = vunpack.c.l.b16 %v2102
    %v2199 = vunpack.c.l.b16 %v2103
    %v2200 = vunpack.c.l.b16 %v2104
    %v2201 = vunpack.c.l.b16 %v2105
    %v2202 = vunpack.c.l.b16 %v2106
    %v2203 = vunpack.c.l.b16 %v2107
    %v2204 = vunpack.c.l.b16 %v2108
    %v2205 = vunpack.c.l.b16 %v2109
    %v2206 = vunpack.c.l.b16 %v2110
    %v2207 = vunpack.c.l.b16 %v2111
    %v2208 = vunpack.c.l.b16 %v2112
    %v2209 = vunpack.c.l.b16 %v2113
    %v2210 = vunpack.c.l.b16 %v2114
    %v2211 = vunpack.c.l.b16 %v2115
    %v2212 = vunpack.c.l.b16 %v2116
    %v2213 = vunpack.c.l.b16 %v2117
    %v2214 = vunpack.c.l.b16 %v2118
    %v2215 = vunpack.c.l.b16 %v2119
    %v2216 = vunpack.c.l.b16 %v2120
    %v2217 = vpack.c.b16 %v2170, %v2169
    %v2218 = vpack.c.b16 %v2172, %v2171
    %v2219 = vpack.c.b16 %v2174, %v2173
    %v2220 = vpack.c.b16 %v2176, %v2175
    %v2221 = vpack.c.b16 %v2178, %v2177
    %v2222 = vpack.c.b16 %v2180, %v2179
    %v2223 = vpack.c.b16 %v2182, %v2181
    %v2224 = vpack.c.b16 %v2184, %v2183
    %v2225 = vpack.c.b16 %v2186, %v2185
    %v2226 = vpack.c.b16 %v2188, %v2187
    %v2227 = vpack.c.b16 %v2190, %v2189
    %v2228 = vpack.c.b16 %v2192, %v2191
    %v2229 = vpack.c.b16 %v2194, %v2193
    %v2230 = vpack.c.b16 %v2196, %v2195
    %v2231 = vpack.c.b16 %v2198, %v2197
    %v2232 = vpack.c.b16 %v2200, %v2199
    %v2233 = vpack.c.b16 %v2202, %v2201
    %v2234 = vpack.c.b16 %v2204, %v2203
    %v2235 = vpack.c.b16 %v2206, %v2205
    %v2236 = vpack.c.b16 %v2208, %v2207
    %v2237 = vpack.c.b16 %v2210, %v2209
    %v2238 = vpack.c.b16 %v2212, %v2211
    %v2239 = vpack.c.b16 %v2214, %v2213
    %v2240 = vpack.c.b16 %v2216, %v2215
    %2265 = vmatprep.subr.bf16.mxu0 0
    %2266 = vmatpush1.bf16.msra.mxu0 %v2217
    %2267 = vmatprep.subr.bf16.mxu0 0
    %2268 = vmatpush1.bf16.msra.mxu0 %v2218
    %2269 = vmatprep.subr.bf16.mxu0 0
    %2270 = vmatpush1.bf16.msra.mxu0 %v2219
    %2271 = vmatprep.subr.bf16.mxu0 0
    %2272 = vmatpush1.bf16.msra.mxu0 %v2220
    %2273 = vmatprep.subr.bf16.mxu0 0
    %2274 = vmatpush1.bf16.msra.mxu0 %v2221
    %2275 = vmatprep.subr.bf16.mxu0 0
    %2276 = vmatpush1.bf16.msra.mxu0 %v2222
    %2277 = vmatprep.subr.bf16.mxu0 0
    %2278 = vmatpush1.bf16.msra.mxu0 %v2223
    %2279 = vmatprep.subr.bf16.mxu0 0
    %2280 = vmatpush1.bf16.msra.mxu0 %v2224
    %2281 = vmatprep.subr.bf16.mxu0 0
    %2282 = vmatpush1.bf16.msra.mxu0 %v2225
    %2283 = vmatprep.subr.bf16.mxu0 0
    %2284 = vmatpush1.bf16.msra.mxu0 %v2226
    %2285 = vmatprep.subr.bf16.mxu0 0
    %2286 = vmatpush1.bf16.msra.mxu0 %v2227
    %2287 = vmatprep.subr.bf16.mxu0 0
    %2288 = vmatpush1.bf16.msra.mxu0 %v2228
    %2289 = vmatprep.subr.bf16.mxu0 0
    %2290 = vmatpush1.bf16.msra.mxu0 %v2229
    %2291 = vmatprep.subr.bf16.mxu0 0
    %2292 = vmatpush1.bf16.msra.mxu0 %v2230
    %2293 = vmatprep.subr.bf16.mxu0 0
    %2294 = vmatpush1.bf16.msra.mxu0 %v2231
    %2295 = vmatprep.subr.bf16.mxu0 0
    %2296 = vmatpush1.bf16.msra.mxu0 %v2232
    %2297 = vmatprep.mubr.bf16.mxu0 %v2026
    %2298 = vmatmul.mubr.bf16.gmra.mrb[0].mxu0 %v2025
    %v2299 = vpop.f32.mrb[0].mxu0
    %v2300 = vadd.f32 0.0, %v2299
    %v2301 = vpop.f32.mrb[0].mxu0
    %v2302 = vpop.f32.mrb[0].mxu0
    %v2303 = vadd.f32 0.0, %v2302
    %v2304 = vpop.f32.mrb[0].mxu0
    %2305 = vmatprep.mubr.bf16.mxu0 %v2029
    %2306 = vmatmul.mubr.bf16.gmra.mrb[0].mxu0 %v2028
    %v2307 = vpop.f32.mrb[0].mxu0
    %v2308 = vadd.f32 0.0, %v2307
    %v2309 = vpop.f32.mrb[0].mxu0
    %v2310 = vpop.f32.mrb[0].mxu0
    %v2311 = vadd.f32 0.0, %v2310
    %v2312 = vpop.f32.mrb[0].mxu0
    %2313 = vmatprep.mubr.bf16.mxu0 %v2032
    %2314 = vmatmul.mubr.bf16.gmra.mrb[0].mxu0 %v2031
    %v2315 = vpop.f32.mrb[0].mxu0
    %v2316 = vadd.f32 0.0, %v2315
    %v2317 = vpop.f32.mrb[0].mxu0
    %v2318 = vpop.f32.mrb[0].mxu0
    %v2319 = vadd.f32 0.0, %v2318
    %v2320 = vpop.f32.mrb[0].mxu0
    %2321 = vmatprep.mubr.bf16.mxu0 %v2035
    %2322 = vmatmul.mubr.bf16.gmra.mrb[0].mxu0 %v2034
    %v2323 = vpop.f32.mrb[0].mxu0
    %v2324 = vadd.f32 0.0, %v2323
    %v2325 = vpop.f32.mrb[0].mxu0
    %v2326 = vpop.f32.mrb[0].mxu0
    %v2327 = vadd.f32 0.0, %v2326
    %v2328 = vpop.f32.mrb[0].mxu0
    %2329 = vmatprep.mubr.bf16.mxu0 %v2038
    %2330 = vmatmul.mubr.bf16.gmra.mrb[0].mxu0 %v2037
    %v2331 = vpop.f32.mrb[0].mxu0
    %v2332 = vadd.f32 0.0, %v2331
    %v2333 = vpop.f32.mrb[0].mxu0
    %v2334 = vpop.f32.mrb[0].mxu0
    %v2335 = vadd.f32 0.0, %v2334
    %v2336 = vpop.f32.mrb[0].mxu0
    %2337 = vmatprep.mubr.bf16.mxu0 %v2041
    %2338 = vmatmul.mubr.bf16.gmra.mrb[0].mxu0 %v2040
    %v2339 = vpop.f32.mrb[0].mxu0
    %v2340 = vadd.f32 0.0, %v2339
    %v2341 = vpop.f32.mrb[0].mxu0
    %v2342 = vpop.f32.mrb[0].mxu0
    %v2343 = vadd.f32 0.0, %v2342
    %v2344 = vpop.f32.mrb[0].mxu0
    %2345 = vmatprep.mubr.bf16.mxu0 %v2044
    %2346 = vmatmul.mubr.bf16.gmra.mrb[0].mxu0 %v2043
    %v2347 = vpop.f32.mrb[0].mxu0
    %v2348 = vadd.f32 0.0, %v2347
    %v2349 = vpop.f32.mrb[0].mxu0
    %v2350 = vpop.f32.mrb[0].mxu0
    %v2351 = vadd.f32 0.0, %v2350
    %v2352 = vpop.f32.mrb[0].mxu0
    %2353 = vmatprep.mubr.bf16.mxu0 %v2047
    %2354 = vmatmul.mubr.bf16.gmra.mrb[0].mxu0 %v2046
    %v2355 = vpop.f32.mrb[0].mxu0
    %v2356 = vadd.f32 0.0, %v2355
    %v2357 = vpop.f32.mrb[0].mxu0
    %v2358 = vpop.f32.mrb[0].mxu0
    %v2359 = vadd.f32 0.0, %v2358
    %v2360 = vpop.f32.mrb[0].mxu0
    %2361 = vmatprep.mubr.bf16.mxu0 %v2050
    %2362 = vmatmul.mubr.bf16.gmra.mrb[0].mxu0 %v2049
    %v2363 = vpop.f32.mrb[0].mxu0
    %v2364 = vadd.f32 0.0, %v2363
    %v2365 = vpop.f32.mrb[0].mxu0
    %v2366 = vpop.f32.mrb[0].mxu0
    %v2367 = vadd.f32 0.0, %v2366
    %v2368 = vpop.f32.mrb[0].mxu0
    %2369 = vmatprep.mubr.bf16.mxu0 %v2053
    %2370 = vmatmul.mubr.bf16.gmra.mrb[0].mxu0 %v2052
    %v2371 = vpop.f32.mrb[0].mxu0
    %v2372 = vadd.f32 0.0, %v2371
    %v2373 = vpop.f32.mrb[0].mxu0
    %v2374 = vpop.f32.mrb[0].mxu0
    %v2375 = vadd.f32 0.0, %v2374
    %v2376 = vpop.f32.mrb[0].mxu0
    %2377 = vmatprep.mubr.bf16.mxu0 %v2056
    %2378 = vmatmul.mubr.bf16.gmra.mrb[0].mxu0 %v2055
    %v2379 = vpop.f32.mrb[0].mxu0
    %v2380 = vadd.f32 0.0, %v2379
    %v2381 = vpop.f32.mrb[0].mxu0
    %v2382 = vpop.f32.mrb[0].mxu0
    %v2383 = vadd.f32 0.0, %v2382
    %v2384 = vpop.f32.mrb[0].mxu0
    %2385 = vmatprep.mubr.bf16.mxu0 %v2059
    %2386 = vmatmul.mubr.bf16.gmra.mrb[0].mxu0 %v2058
    %v2387 = vpop.f32.mrb[0].mxu0
    %v2388 = vadd.f32 0.0, %v2387
    %v2389 = vpop.f32.mrb[0].mxu0
    %v2390 = vpop.f32.mrb[0].mxu0
    %v2391 = vadd.f32 0.0, %v2390
    %v2392 = vpop.f32.mrb[0].mxu0
    %2393 = vmatprep.mubr.bf16.mxu0 %v2062
    %2394 = vmatmul.mubr.bf16.gmra.mrb[0].mxu0 %v2061
    %v2395 = vpop.f32.mrb[0].mxu0
    %v2396 = vadd.f32 0.0, %v2395
    %v2397 = vpop.f32.mrb[0].mxu0
    %v2398 = vpop.f32.mrb[0].mxu0
    %v2399 = vadd.f32 0.0, %v2398
    %v2400 = vpop.f32.mrb[0].mxu0
    %2401 = vmatprep.mubr.bf16.mxu0 %v2065
    %2402 = vmatmul.mubr.bf16.gmra.mrb[0].mxu0 %v2064
    %v2403 = vpop.f32.mrb[0].mxu0
    %v2404 = vadd.f32 0.0, %v2403
    %v2405 = vpop.f32.mrb[0].mxu0
    %v2406 = vpop.f32.mrb[0].mxu0
    %v2407 = vadd.f32 0.0, %v2406
    %v2408 = vpop.f32.mrb[0].mxu0
    %2409 = vmatprep.mubr.bf16.mxu0 %v2068
    %2410 = vmatmul.mubr.bf16.gmra.mrb[0].mxu0 %v2067
    %v2411 = vpop.f32.mrb[0].mxu0
    %v2412 = vadd.f32 0.0, %v2411
    %v2413 = vpop.f32.mrb[0].mxu0
    %v2414 = vpop.f32.mrb[0].mxu0
    %v2415 = vadd.f32 0.0, %v2414
    %v2416 = vpop.f32.mrb[0].mxu0
    %2417 = vmatprep.mubr.bf16.mxu0 %v2071
    %2418 = vmatmul.mubr.bf16.gmra.mrb[0].mxu0 %v2070
    %v2419 = vpop.f32.mrb[0].mxu0
    %v2420 = vadd.f32 0.0, %v2419
    %v2421 = vpop.f32.mrb[0].mxu0
    %v2422 = vpop.f32.mrb[0].mxu0
    %v2423 = vadd.f32 0.0, %v2422
    %v2424 = vpop.f32.mrb[0].mxu0
    %2425 = vdwg.mxu0
    %2426 = vmatprep.subr.bf16.mxu0 0
    %2427 = vmatpush1.bf16.msra.mxu0 %v2233
    %2428 = vmatprep.subr.bf16.mxu0 0
    %2429 = vmatpush1.bf16.msra.mxu0 %v2234
    %2430 = vmatprep.subr.bf16.mxu0 0
    %2431 = vmatpush1.bf16.msra.mxu0 %v2235
    %2432 = vmatprep.subr.bf16.mxu0 0
    %2433 = vmatpush1.bf16.msra.mxu0 %v2236
    %2434 = vmatprep.subr.bf16.mxu0 0
    %2435 = vmatpush1.bf16.msra.mxu0 %v2237
    %2436 = vmatprep.subr.bf16.mxu0 0
    %2437 = vmatpush1.bf16.msra.mxu0 %v2238
    %2438 = vmatprep.subr.bf16.mxu0 0
    %2439 = vmatpush1.bf16.msra.mxu0 %v2239
    %2440 = vmatprep.subr.bf16.mxu0 0
    %2441 = vmatpush1.bf16.msra.mxu0 %v2240
    %2442 = vmatprep.subr.bf16.mxu0 0
    %2443 = vmatpush1.bf16.msra.mxu0 0
    %2444 = vmatprep.subr.bf16.mxu0 0
    %2445 = vmatpush1.bf16.msra.mxu0 0
    %2446 = vmatprep.subr.bf16.mxu0 0
    %2447 = vmatpush1.bf16.msra.mxu0 0
    %2448 = vmatprep.subr.bf16.mxu0 0
    %2449 = vmatpush1.bf16.msra.mxu0 0
    %2450 = vmatprep.subr.bf16.mxu0 0
    %2451 = vmatpush1.bf16.msra.mxu0 0
    %2452 = vmatprep.subr.bf16.mxu0 0
    %2453 = vmatpush1.bf16.msra.mxu0 0
    %2454 = vmatprep.subr.bf16.mxu0 0
    %2455 = vmatpush1.bf16.msra.mxu0 0
    %2456 = vmatprep.subr.bf16.mxu0 0
    %2457 = vmatpush1.bf16.msra.mxu0 0
    %2458 = vmatprep.mubr.bf16.mxu0 0
    %2459 = vmatmul.mubr.bf16.gmra.mrb[0].mxu0 %v2027
    %v2460 = vpop.f32.mrb[0].mxu0
    %v2461 = vadd.f32 %v2300, %v2460
    %v2462 = vpop.f32.mrb[0].mxu0
    %v2463 = vpop.f32.mrb[0].mxu0
    %v2464 = vadd.f32 %v2303, %v2463
    %v2465 = vpop.f32.mrb[0].mxu0
    %2466 = vmatprep.mubr.bf16.mxu0 0
    %2467 = vmatmul.mubr.bf16.gmra.mrb[0].mxu0 %v2030
    %v2468 = vpop.f32.mrb[0].mxu0
    %v2469 = vadd.f32 %v2308, %v2468
    %v2470 = vpop.f32.mrb[0].mxu0
    %v2471 = vpop.f32.mrb[0].mxu0
    %v2472 = vadd.f32 %v2311, %v2471
    %v2473 = vpop.f32.mrb[0].mxu0
    %2474 = vmatprep.mubr.bf16.mxu0 0
    %2475 = vmatmul.mubr.bf16.gmra.mrb[0].mxu0 %v2033
    %v2476 = vpop.f32.mrb[0].mxu0
    %v2477 = vadd.f32 %v2316, %v2476
    %v2478 = vpop.f32.mrb[0].mxu0
    %v2479 = vpop.f32.mrb[0].mxu0
    %v2480 = vadd.f32 %v2319, %v2479
    %v2481 = vpop.f32.mrb[0].mxu0
    %2482 = vmatprep.mubr.bf16.mxu0 0
    %2483 = vmatmul.mubr.bf16.gmra.mrb[0].mxu0 %v2036
    %v2484 = vpop.f32.mrb[0].mxu0
    %v2485 = vadd.f32 %v2324, %v2484
    %v2486 = vpop.f32.mrb[0].mxu0
    %v2487 = vpop.f32.mrb[0].mxu0
    %v2488 = vadd.f32 %v2327, %v2487
    %v2489 = vpop.f32.mrb[0].mxu0
    %2490 = vmatprep.mubr.bf16.mxu0 0
    %2491 = vmatmul.mubr.bf16.gmra.mrb[0].mxu0 %v2039
    %v2492 = vpop.f32.mrb[0].mxu0
    %v2493 = vadd.f32 %v2332, %v2492
    %v2494 = vpop.f32.mrb[0].mxu0
    %v2495 = vpop.f32.mrb[0].mxu0
    %v2496 = vadd.f32 %v2335, %v2495
    %v2497 = vpop.f32.mrb[0].mxu0
    %2498 = vmatprep.mubr.bf16.mxu0 0
    %2499 = vmatmul.mubr.bf16.gmra.mrb[0].mxu0 %v2042
    %v2500 = vpop.f32.mrb[0].mxu0
    %v2501 = vadd.f32 %v2340, %v2500
    %v2502 = vpop.f32.mrb[0].mxu0
    %v2503 = vpop.f32.mrb[0].mxu0
    %v2504 = vadd.f32 %v2343, %v2503
    %v2505 = vpop.f32.mrb[0].mxu0
    %2506 = vmatprep.mubr.bf16.mxu0 0
    %2507 = vmatmul.mubr.bf16.gmra.mrb[0].mxu0 %v2045
    %v2508 = vpop.f32.mrb[0].mxu0
    %v2509 = vadd.f32 %v2348, %v2508
    %v2510 = vpop.f32.mrb[0].mxu0
    %v2511 = vpop.f32.mrb[0].mxu0
    %v2512 = vadd.f32 %v2351, %v2511
    %v2513 = vpop.f32.mrb[0].mxu0
    %2514 = vmatprep.mubr.bf16.mxu0 0
    %2515 = vmatmul.mubr.bf16.gmra.mrb[0].mxu0 %v2048
    %v2516 = vpop.f32.mrb[0].mxu0
    %v2517 = vadd.f32 %v2356, %v2516
    %v2518 = vpop.f32.mrb[0].mxu0
    %v2519 = vpop.f32.mrb[0].mxu0
    %v2520 = vadd.f32 %v2359, %v2519
    %v2521 = vpop.f32.mrb[0].mxu0
    %2522 = vmatprep.mubr.bf16.mxu0 0
    %2523 = vmatmul.mubr.bf16.gmra.mrb[0].mxu0 %v2051
    %v2524 = vpop.f32.mrb[0].mxu0
    %v2525 = vadd.f32 %v2364, %v2524
    %v2526 = vpop.f32.mrb[0].mxu0
    %v2527 = vpop.f32.mrb[0].mxu0
    %v2528 = vadd.f32 %v2367, %v2527
    %v2529 = vpop.f32.mrb[0].mxu0
    %2530 = vmatprep.mubr.bf16.mxu0 0
    %2531 = vmatmul.mubr.bf16.gmra.mrb[0].mxu0 %v2054
    %v2532 = vpop.f32.mrb[0].mxu0
    %v2533 = vadd.f32 %v2372, %v2532
    %v2534 = vpop.f32.mrb[0].mxu0
    %v2535 = vpop.f32.mrb[0].mxu0
    %v2536 = vadd.f32 %v2375, %v2535
    %v2537 = vpop.f32.mrb[0].mxu0
    %2538 = vmatprep.mubr.bf16.mxu0 0
    %2539 = vmatmul.mubr.bf16.gmra.mrb[0].mxu0 %v2057
    %v2540 = vpop.f32.mrb[0].mxu0
    %v2541 = vadd.f32 %v2380, %v2540
    %v2542 = vpop.f32.mrb[0].mxu0
    %v2543 = vpop.f32.mrb[0].mxu0
    %v2544 = vadd.f32 %v2383, %v2543
    %v2545 = vpop.f32.mrb[0].mxu0
    %2546 = vmatprep.mubr.bf16.mxu0 0
    %2547 = vmatmul.mubr.bf16.gmra.mrb[0].mxu0 %v2060
    %v2548 = vpop.f32.mrb[0].mxu0
    %v2549 = vadd.f32 %v2388, %v2548
    %v2550 = vpop.f32.mrb[0].mxu0
    %v2551 = vpop.f32.mrb[0].mxu0
    %v2552 = vadd.f32 %v2391, %v2551
    %v2553 = vpop.f32.mrb[0].mxu0
    %2554 = vmatprep.mubr.bf16.mxu0 0
    %2555 = vmatmul.mubr.bf16.gmra.mrb[0].mxu0 %v2063
    %v2556 = vpop.f32.mrb[0].mxu0
    %v2557 = vadd.f32 %v2396, %v2556
    %v2558 = vpop.f32.mrb[0].mxu0
    %v2559 = vpop.f32.mrb[0].mxu0
    %v2560 = vadd.f32 %v2399, %v2559
    %v2561 = vpop.f32.mrb[0].mxu0
    %2562 = vmatprep.mubr.bf16.mxu0 0
    %2563 = vmatmul.mubr.bf16.gmra.mrb[0].mxu0 %v2066
    %v2564 = vpop.f32.mrb[0].mxu0
    %v2565 = vadd.f32 %v2404, %v2564
    %v2566 = vpop.f32.mrb[0].mxu0
    %v2567 = vpop.f32.mrb[0].mxu0
    %v2568 = vadd.f32 %v2407, %v2567
    %v2569 = vpop.f32.mrb[0].mxu0
    %2570 = vmatprep.mubr.bf16.mxu0 0
    %2571 = vmatmul.mubr.bf16.gmra.mrb[0].mxu0 %v2069
    %v2572 = vpop.f32.mrb[0].mxu0
    %v2573 = vadd.f32 %v2412, %v2572
    %v2574 = vpop.f32.mrb[0].mxu0
    %v2575 = vpop.f32.mrb[0].mxu0
    %v2576 = vadd.f32 %v2415, %v2575
    %v2577 = vpop.f32.mrb[0].mxu0
    %2578 = vmatprep.mubr.bf16.mxu0 0
    %2579 = vmatmul.mubr.bf16.gmra.mrb[0].mxu0 %v2072
    %v2580 = vpop.f32.mrb[0].mxu0
    %v2581 = vadd.f32 %v2420, %v2580
    %v2582 = vpop.f32.mrb[0].mxu0
    %v2583 = vpop.f32.mrb[0].mxu0
    %v2584 = vadd.f32 %v2423, %v2583
    %v2585 = vpop.f32.mrb[0].mxu0
    %2586 = vdwg.mxu0
    %v2587 = vadd.f32 %v1993, %v2461
    %v2588 = vadd.f32 %v1994, %v2464
    %v2589 = vadd.f32 %v1995, %v2469
    %v2590 = vadd.f32 %v1996, %v2472
    %v2591 = vadd.f32 %v1997, %v2477
    %v2592 = vadd.f32 %v1998, %v2480
    %v2593 = vadd.f32 %v1999, %v2485
    %v2594 = vadd.f32 %v2000, %v2488
    %v2595 = vadd.f32 %v2001, %v2493
    %v2596 = vadd.f32 %v2002, %v2496
    %v2597 = vadd.f32 %v2003, %v2501
    %v2598 = vadd.f32 %v2004, %v2504
    %v2599 = vadd.f32 %v2005, %v2509
    %v2600 = vadd.f32 %v2006, %v2512
    %v2601 = vadd.f32 %v2007, %v2517
    %v2602 = vadd.f32 %v2008, %v2520
    %v2603 = vadd.f32 %v2009, %v2525
    %v2604 = vadd.f32 %v2010, %v2528
    %v2605 = vadd.f32 %v2011, %v2533
    %v2606 = vadd.f32 %v2012, %v2536
    %v2607 = vadd.f32 %v2013, %v2541
    %v2608 = vadd.f32 %v2014, %v2544
    %v2609 = vadd.f32 %v2015, %v2549
    %v2610 = vadd.f32 %v2016, %v2552
    %v2611 = vadd.f32 %v2017, %v2557
    %v2612 = vadd.f32 %v2018, %v2560
    %v2613 = vadd.f32 %v2019, %v2565
    %v2614 = vadd.f32 %v2020, %v2568
    %v2615 = vadd.f32 %v2021, %v2573
    %v2616 = vadd.f32 %v2022, %v2576
    %v2617 = vadd.f32 %v2023, %v2581
    %v2618 = vadd.f32 %v2024, %v2584
    %2619 = vst [vmem:[#allocation2] sm:$0xff] %v2587
    %2620 = vst [vmem:[#allocation2 + $0x8] sm:$0xff] %v2588
    %2621 = vst [vmem:[#allocation2 + $0x10] sm:$0xff] %v2589
    %2622 = vst [vmem:[#allocation2 + $0x18] sm:$0xff] %v2590
    %2623 = vst [vmem:[#allocation2 + $0x20] sm:$0xff] %v2591
    %2624 = vst [vmem:[#allocation2 + $0x28] sm:$0xff] %v2592
    %2625 = vst [vmem:[#allocation2 + $0x30] sm:$0xff] %v2593
    %2626 = vst [vmem:[#allocation2 + $0x38] sm:$0xff] %v2594
    %2627 = vst [vmem:[#allocation2 + $0x40] sm:$0xff] %v2595
    %2628 = vst [vmem:[#allocation2 + $0x48] sm:$0xff] %v2596
    %2629 = vst [vmem:[#allocation2 + $0x50] sm:$0xff] %v2597
    %2630 = vst [vmem:[#allocation2 + $0x58] sm:$0xff] %v2598
    %2631 = vst [vmem:[#allocation2 + $0x60] sm:$0xff] %v2599
    %2632 = vst [vmem:[#allocation2 + $0x68] sm:$0xff] %v2600
    %2633 = vst [vmem:[#allocation2 + $0x70] sm:$0xff] %v2601
    %2634 = vst [vmem:[#allocation2 + $0x78] sm:$0xff] %v2602
    %2635 = vst [vmem:[#allocation2 + $0x80] sm:$0xff] %v2603
    %2636 = vst [vmem:[#allocation2 + $0x88] sm:$0xff] %v2604
    %2637 = vst [vmem:[#allocation2 + $0x90] sm:$0xff] %v2605
    %2638 = vst [vmem:[#allocation2 + $0x98] sm:$0xff] %v2606
    %2639 = vst [vmem:[#allocation2 + $0xa0] sm:$0xff] %v2607
    %2640 = vst [vmem:[#allocation2 + $0xa8] sm:$0xff] %v2608
    %2641 = vst [vmem:[#allocation2 + $0xb0] sm:$0xff] %v2609
    %2642 = vst [vmem:[#allocation2 + $0xb8] sm:$0xff] %v2610
    %2643 = vst [vmem:[#allocation2 + $0xc0] sm:$0xff] %v2611
    %2644 = vst [vmem:[#allocation2 + $0xc8] sm:$0xff] %v2612
    %2645 = vst [vmem:[#allocation2 + $0xd0] sm:$0xff] %v2613
    %2646 = vst [vmem:[#allocation2 + $0xd8] sm:$0xff] %v2614
    %2647 = vst [vmem:[#allocation2 + $0xe0] sm:$0xff] %v2615
    %2648 = vst [vmem:[#allocation2 + $0xe8] sm:$0xff] %v2616
    %2649 = vst [vmem:[#allocation2 + $0xf0] sm:$0xff] %v2617
    %2650 = vst [vmem:[#allocation2 + $0xf8] sm:$0xff] %v2618
    // Predicated region
    $region26: #{_feed_forward_impl.1} parent=1 // pred_check
      %p2651 = pneg %p33
    $region27: #{_feed_forward_impl.1} parent=1 // pred_check_branch
      %2653 = sbr.rel (%p2651) target = $region29
    $region28: #{_feed_forward_impl.1} parent=1 // pred_region
      %v2654 = vld [vmem:[#allocation2] sm:$0xff]
      %v2655 = vld [vmem:[#allocation2 + $0x8] sm:$0xff]
      %v2656 = vld [vmem:[#allocation2 + $0x10] sm:$0xff]
      %v2657 = vld [vmem:[#allocation2 + $0x18] sm:$0xff]
      %v2658 = vld [vmem:[#allocation2 + $0x20] sm:$0xff]
      %v2659 = vld [vmem:[#allocation2 + $0x28] sm:$0xff]
      %v2660 = vld [vmem:[#allocation2 + $0x30] sm:$0xff]
      %v2661 = vld [vmem:[#allocation2 + $0x38] sm:$0xff]
      %v2662 = vld [vmem:[#allocation2 + $0x40] sm:$0xff]
      %v2663 = vld [vmem:[#allocation2 + $0x48] sm:$0xff]
      %v2664 = vld [vmem:[#allocation2 + $0x50] sm:$0xff]
      %v2665 = vld [vmem:[#allocation2 + $0x58] sm:$0xff]
      %v2666 = vld [vmem:[#allocation2 + $0x60] sm:$0xff]
      %v2667 = vld [vmem:[#allocation2 + $0x68] sm:$0xff]
      %v2668 = vld [vmem:[#allocation2 + $0x70] sm:$0xff]
      %v2669 = vld [vmem:[#allocation2 + $0x78] sm:$0xff]
      %v2670 = vld [vmem:[#allocation2 + $0x80] sm:$0xff]
      %v2671 = vld [vmem:[#allocation2 + $0x88] sm:$0xff]
      %v2672 = vld [vmem:[#allocation2 + $0x90] sm:$0xff]
      %v2673 = vld [vmem:[#allocation2 + $0x98] sm:$0xff]
      %v2674 = vld [vmem:[#allocation2 + $0xa0] sm:$0xff]
      %v2675 = vld [vmem:[#allocation2 + $0xa8] sm:$0xff]
      %v2676 = vld [vmem:[#allocation2 + $0xb0] sm:$0xff]
      %v2677 = vld [vmem:[#allocation2 + $0xb8] sm:$0xff]
      %v2678 = vld [vmem:[#allocation2 + $0xc0] sm:$0xff]
      %v2679 = vld [vmem:[#allocation2 + $0xc8] sm:$0xff]
      %v2680 = vld [vmem:[#allocation2 + $0xd0] sm:$0xff]
      %v2681 = vld [vmem:[#allocation2 + $0xd8] sm:$0xff]
      %v2682 = vld [vmem:[#allocation2 + $0xe0] sm:$0xff]
      %v2683 = vld [vmem:[#allocation2 + $0xe8] sm:$0xff]
      %v2684 = vld [vmem:[#allocation2 + $0xf0] sm:$0xff]
      %v2685 = vld [vmem:[#allocation2 + $0xf8] sm:$0xff]
      %2686 = vst [vmem:[#allocation6] sm:$0xff] %v2654
      %2687 = vst [vmem:[#allocation6 + $0x8] sm:$0xff] %v2655
      %2688 = vst [vmem:[#allocation6 + $0x10] sm:$0xff] %v2656
      %2689 = vst [vmem:[#allocation6 + $0x18] sm:$0xff] %v2657
      %2690 = vst [vmem:[#allocation6 + $0x20] sm:$0xff] %v2658
      %2691 = vst [vmem:[#allocation6 + $0x28] sm:$0xff] %v2659
      %2692 = vst [vmem:[#allocation6 + $0x30] sm:$0xff] %v2660
      %2693 = vst [vmem:[#allocation6 + $0x38] sm:$0xff] %v2661
      %2694 = vst [vmem:[#allocation6 + $0x40] sm:$0xff] %v2662
      %2695 = vst [vmem:[#allocation6 + $0x48] sm:$0xff] %v2663
      %2696 = vst [vmem:[#allocation6 + $0x50] sm:$0xff] %v2664
      %2697 = vst [vmem:[#allocation6 + $0x58] sm:$0xff] %v2665
      %2698 = vst [vmem:[#allocation6 + $0x60] sm:$0xff] %v2666
      %2699 = vst [vmem:[#allocation6 + $0x68] sm:$0xff] %v2667
      %2700 = vst [vmem:[#allocation6 + $0x70] sm:$0xff] %v2668
      %2701 = vst [vmem:[#allocation6 + $0x78] sm:$0xff] %v2669
      %2702 = vst [vmem:[#allocation6 + $0x80] sm:$0xff] %v2670
      %2703 = vst [vmem:[#allocation6 + $0x88] sm:$0xff] %v2671
      %2704 = vst [vmem:[#allocation6 + $0x90] sm:$0xff] %v2672
      %2705 = vst [vmem:[#allocation6 + $0x98] sm:$0xff] %v2673
      %2706 = vst [vmem:[#allocation6 + $0xa0] sm:$0xff] %v2674
      %2707 = vst [vmem:[#allocation6 + $0xa8] sm:$0xff] %v2675
      %2708 = vst [vmem:[#allocation6 + $0xb0] sm:$0xff] %v2676
      %2709 = vst [vmem:[#allocation6 + $0xb8] sm:$0xff] %v2677
      %2710 = vst [vmem:[#allocation6 + $0xc0] sm:$0xff] %v2678
      %2711 = vst [vmem:[#allocation6 + $0xc8] sm:$0xff] %v2679
      %2712 = vst [vmem:[#allocation6 + $0xd0] sm:$0xff] %v2680
      %2713 = vst [vmem:[#allocation6 + $0xd8] sm:$0xff] %v2681
      %2714 = vst [vmem:[#allocation6 + $0xe0] sm:$0xff] %v2682
      %2715 = vst [vmem:[#allocation6 + $0xe8] sm:$0xff] %v2683
      %2716 = vst [vmem:[#allocation6 + $0xf0] sm:$0xff] %v2684
      %2717 = vst [vmem:[#allocation6 + $0xf8] sm:$0xff] %v2685
    $region29: #{_feed_forward_impl.1} parent=1 // pred_fallthru
      _
    // Predicated region
    $region30: #{_feed_forward_impl.1} parent=1 // pred_check
      _
    $region31: #{_feed_forward_impl.1} parent=1 // pred_check_branch
      %2719 = sbr.rel (0) target = $region33
    $region32: #{_feed_forward_impl.1} parent=1 // pred_region
      %s2721 = ssub.s32 4096, 4096
      %2722 = vsyncadd [#allocation5], %s2721
      %s2723 = sshll.u32 [#allocation6], 4
      %s2724 = int_to_ptr.vmem [resolvable:$true] %s2723
      %2729 = dma.vmem_to_hbm [thread:$0]  %s2724, 4096, %s4, [#allocation5], 128, 128, 8
    $region33: #{_feed_forward_impl.1} parent=1 // pred_fallthru
      _
    // Predicated region
    $region34: #{_feed_forward_impl.1} parent=1 // pred_check
      _
    $region35: #{_feed_forward_impl.1} parent=1 // pred_check_branch
      %2731 = sbr.rel (0) target = $region37
    $region36: #{_feed_forward_impl.1} parent=1 // pred_region
      %2732 = dma.done [#allocation5], 4096
    $region37: #{_feed_forward_impl.1} parent=1 // pred_fallthru
      _
    %2733 = vsyncpa [#allocation4], 1
    %2734 = vsyncpa [#allocation5], 1

</llo_original>
